<compile_context>
chip_gen: v5e
topology: v5e:2x2
jax: 0.10.0
libtpu: 0.0.40
codegen_flags: <defaults>
</compile_context>

<pallas_src>
import functools

import jax
import jax.numpy as jnp
from jax.experimental import pallas as pl
from jax.experimental.pallas import tpu as pltpu

EPS = 1e-5


def _round_up(x, m):
    return ((x + m - 1) // m) * m


def _vmem_capacity_bytes():
    """Physical per-core VMEM (v5e/v6e ~128 MiB, v7x 64 MiB); safe fallback."""
    try:
        return int(pltpu.get_tpu_info().vmem_capacity_bytes)
    except Exception:
        return 64 * 1024 * 1024


def _lane_mask(width, n_valid):
    """f32 (1, width) mask: 1.0 on lanes < n_valid, 0.0 elsewhere."""
    lane = jax.lax.broadcasted_iota(jnp.int32, (1, width), 1)
    return (lane < n_valid).astype(jnp.float32)


def _layernorm_masked(x, gamma, beta, n_valid, mask=None):
    """Two-pass LayerNorm over the n_valid valid lanes of x.

    Requires padding lanes of x to be exactly zero (so the sums are exact);
    `mask` (1 on valid lanes) must be given whenever padding lanes exist so
    the centered values do not pollute the variance.  gamma/beta are zero in
    padding lanes, so the output padding stays exactly zero."""
    mu = jnp.sum(x, axis=-1, keepdims=True) / n_valid
    xc = x - mu
    if mask is not None:
        xc = xc * mask
    var = jnp.sum(xc * xc, axis=-1, keepdims=True) / n_valid
    return xc * jax.lax.rsqrt(var + EPS) * gamma + beta


def fusion_kernel(t_ref, q_ref, a_ref,   # (tn, H)       bf16 per-modality rows
                  wgt_ref,               # (3, H, 2*Hp)  bf16  [gate | transform]
                  bgt_ref,               # (3, 1, 2*Hp)  f32
                  ln1_ref,               # (2, 1, P3)    f32   (gamma, beta) staggered
                  w1_ref,                # (P3, M)       bf16
                  b1_ref,                # (1, M)        f32
                  ln2_ref,               # (2, 1, M)     f32
                  w2_ref,                # (M, Pout)     bf16
                  b2_ref,                # (1, Pout)     f32
                  ln3_ref,               # (2, 1, Pout)  f32
                  out_ref,               # (tn, Pout)    f32  (sliced to 3H outside)
                  *, H, Hp):
    P3, M = w1_ref.shape
    Pout = out_ref.shape[-1]
    n3, n4 = 3 * H, 4 * H

    def gated(x_ref, i):
        # One MXU pass per modality: columns [0:Hp] gate, [Hp:2Hp] transform.
        y = jnp.dot(x_ref[...], wgt_ref[i],
                    preferred_element_type=jnp.float32) + bgt_ref[i]
        # gate padding -> sigmoid(0)=0.5, transform padding -> 0 => product is 0
        return jax.nn.sigmoid(y[:, :Hp]) * y[:, Hp:]

    # Lane-aligned (Hp is a multiple of 128) concat: [text|quad|attn] gated.
    combined = jnp.concatenate(
        [gated(t_ref, 0), gated(q_ref, 1), gated(a_ref, 2)], axis=-1)

    if Hp == H:
        mask1 = None
    else:
        m = _lane_mask(Hp, H)
        mask1 = jnp.concatenate([m, m, m], axis=-1)        # staggered valid lanes
    normalized = _layernorm_masked(combined, ln1_ref[0], ln1_ref[1], n3, mask1)

    h = jnp.dot(normalized.astype(jnp.bfloat16), w1_ref[...],
                preferred_element_type=jnp.float32) + b1_ref[...]
    mask2 = None if M == n4 else _lane_mask(M, n4)
    h = _layernorm_masked(h, ln2_ref[0], ln2_ref[1], n4, mask2)
    h = jnp.maximum(h, 0.0)                                 # ReLU
    # Dropout: identity (eval mode).
    h = jnp.dot(h.astype(jnp.bfloat16), w2_ref[...],
                preferred_element_type=jnp.float32) + b2_ref[...]
    mask3 = None if Pout == n3 else _lane_mask(Pout, n3)
    out_ref[...] = _layernorm_masked(h, ln3_ref[0], ln3_ref[1], n3, mask3)


def prepare_params(p, H):
    """Pad / stagger / bf16-cast parameters for the kernel layout.

    Runs as a handful of tiny XLA ops; in production do this once at model
    load (or under jit) and cache the result."""
    f32 = jnp.float32
    Hp = _round_up(H, 128)
    P3 = 3 * Hp
    M = _round_up(4 * H, 128)
    Pout = _round_up(3 * H, 128)
    n3, n4 = 3 * H, 4 * H

    wgt = jnp.zeros((3, H, 2 * Hp), f32)
    wgt = wgt.at[:, :, :H].set(p["wg"])
    wgt = wgt.at[:, :, Hp:Hp + H].set(p["wt"])
    bgt = jnp.zeros((3, 1, 2 * Hp), f32)
    bgt = bgt.at[:, :, :H].set(p["bg"])
    bgt = bgt.at[:, :, Hp:Hp + H].set(p["bt"])

    # Stagger the 3H-contiguous LN1/W1-row params into Hp-aligned modality slots.
    w1 = jnp.zeros((P3, M), f32)
    ln1 = jnp.zeros((2, 1, P3), f32)
    for i in range(3):
        w1 = w1.at[i * Hp:i * Hp + H, :n4].set(p["w1"][i * H:(i + 1) * H, :])
        ln1 = ln1.at[:, :, i * Hp:i * Hp + H].set(p["ln1"][:, :, i * H:(i + 1) * H])

    w2 = jnp.zeros((M, Pout), f32).at[:n4, :n3].set(p["w2"])
    b1 = jnp.zeros((1, M), f32).at[:, :n4].set(p["b1"])
    b2 = jnp.zeros((1, Pout), f32).at[:, :n3].set(p["b2"])
    ln2 = jnp.zeros((2, 1, M), f32).at[:, :, :n4].set(p["ln2"])
    ln3 = jnp.zeros((2, 1, Pout), f32).at[:, :, :n3].set(p["ln3"])

    return {
        "wgt": wgt.astype(jnp.bfloat16), "bgt": bgt, "ln1": ln1,
        "w1": w1.astype(jnp.bfloat16), "b1": b1, "ln2": ln2,
        "w2": w2.astype(jnp.bfloat16), "b2": b2, "ln3": ln3,
        "dims": (Hp, P3, M, Pout),
    }


def _vmem_estimate(tn, H, Hp, P3, M, Pout):
    """Rough VMEM bytes: single-buffered weights + double-buffered I/O tiles
    + f32 intermediates."""
    bf, f4 = 2, 4
    weights = (3 * H * 2 * Hp * bf + 3 * 2 * Hp * f4 + 2 * P3 * f4
               + P3 * M * bf + M * f4 + 2 * M * f4
               + M * Pout * bf + Pout * f4 + 2 * Pout * f4)
    acts = 2 * (3 * tn * H * bf) + 2 * (tn * Pout * f4)
    inter = tn * (P3 + M + 3 * 2 * Hp) * f4
    return weights + acts + inter


def nonlinear_fusion(text, quad, attn, params, *, tn=None):
    """text/quad/attn: (N, H) float32.  Returns (N, 3H) float32 (eval mode)."""
    N, H = text.shape
    prep = prepare_params(params, H)
    Hp, P3, M, Pout = prep["dims"]
    n3 = 3 * H

    cap_bytes = _vmem_capacity_bytes()
    if tn is None:
        # >= 2 grid steps so the 'parallel' axis can split across v7x's two TCs;
        # larger tiles (up to 256/512 rows, VMEM permitting) amortize the
        # ~0.35 us/step pipeline overhead on v5e/v6e.
        cap_rows = 512 if cap_bytes >= 96 * 1024 * 1024 else 256
        tn = min(cap_rows, max(8, _round_up((N + 1) // 2, 8)))
        while tn > 8 and _vmem_estimate(tn, H, Hp, P3, M, Pout) * 1.4 > cap_bytes:
            tn = max(8, _round_up(tn // 2, 8))
    Np = _round_up(N, tn)

    def prep_x(x):
        x = x.astype(jnp.bfloat16)          # matmul-operand dtype: halves DMA bytes
        if Np > N:
            x = jnp.pad(x, ((0, Np - N), (0, 0)))
        return x

    text, quad, attn = prep_x(text), prep_x(quad), prep_x(attn)

    row_spec = pl.BlockSpec((tn, H), lambda i: (i, 0))

    def const_spec(shape):
        # Constant index map across the grid -> single-buffer (no duplicated
        # weight slabs in VMEM).
        zeros = (0,) * len(shape)
        return pl.BlockSpec(shape, lambda i: zeros, pipeline_mode=pl.Buffered(1))

    in_specs = [
        row_spec, row_spec, row_spec,
        const_spec((3, H, 2 * Hp)),   # gate|transform weights
        const_spec((3, 1, 2 * Hp)),   # gate|transform biases
        const_spec((2, 1, P3)),       # layer_norm (gamma, beta)
        const_spec((P3, M)),          # fusion W1
        const_spec((1, M)),           # fusion b1
        const_spec((2, 1, M)),        # fusion LN1
        const_spec((M, Pout)),        # fusion W2
        const_spec((1, Pout)),        # fusion b2
        const_spec((2, 1, Pout)),     # fusion LN2
    ]
    out_specs = pl.BlockSpec((tn, Pout), lambda i: (i, 0))

    est = _vmem_estimate(tn, H, Hp, P3, M, Pout)
    vmem_limit = int(max(32 * 1024 * 1024,
                         min(int(est * 1.5) + (2 << 20), cap_bytes)))

    out = pl.pallas_call(
        functools.partial(fusion_kernel, H=H, Hp=Hp),
        out_shape=jax.ShapeDtypeStruct((Np, Pout), jnp.float32),
        grid=(Np // tn,),
        in_specs=in_specs,
        out_specs=out_specs,
        compiler_params=pltpu.CompilerParams(
            dimension_semantics=("parallel",),
            vmem_limit_bytes=vmem_limit,
        ),
    )(text, quad, attn,
      prep["wgt"], prep["bgt"], prep["ln1"],
      prep["w1"], prep["b1"], prep["ln2"],
      prep["w2"], prep["b2"], prep["ln3"])

    return out[:N, :n3]


def init_params(key, H):
    ks = jax.random.split(key, 8)
    s = 0.05
    return {
        "wg": jax.random.normal(ks[0], (3, H, H), jnp.float32) * s,
        "bg": jax.random.normal(ks[1], (3, 1, H), jnp.float32) * s,
        "wt": jax.random.normal(ks[2], (3, H, H), jnp.float32) * s,
        "bt": jax.random.normal(ks[3], (3, 1, H), jnp.float32) * s,
        "ln1": jnp.stack([jnp.ones((1, 3 * H), jnp.float32),
                          jnp.zeros((1, 3 * H), jnp.float32)], axis=0),
        "w1": jax.random.normal(ks[4], (3 * H, 4 * H), jnp.float32) * s,
        "b1": jax.random.normal(ks[5], (1, 4 * H), jnp.float32) * s,
        "ln2": jnp.stack([jnp.ones((1, 4 * H), jnp.float32),
                          jnp.zeros((1, 4 * H), jnp.float32)], axis=0),
        "w2": jax.random.normal(ks[6], (4 * H, 3 * H), jnp.float32) * s,
        "b2": jax.random.normal(ks[7], (1, 3 * H), jnp.float32) * s,
        "ln3": jnp.stack([jnp.ones((1, 3 * H), jnp.float32),
                          jnp.zeros((1, 3 * H), jnp.float32)], axis=0),
    }


def _layernorm_ref(x, gamma, beta):
    mu = jnp.mean(x, axis=-1, keepdims=True)
    var = jnp.mean((x - mu) ** 2, axis=-1, keepdims=True)
    return (x - mu) * jax.lax.rsqrt(var + EPS) * gamma + beta


def reference(text, quad, attn, p):
    """Pure-JAX reference mirroring the PyTorch forward (eval mode) with the
    same mixed-precision policy as the kernel (bf16 matmul operands, f32
    accumulation, f32 elsewhere), using the original per-modality weights."""
    def mm(a, w):
        return jnp.dot(a.astype(jnp.bfloat16), w.astype(jnp.bfloat16),
                       preferred_element_type=jnp.float32)

    feats = [text, quad, attn]
    gated = []
    for i in range(3):
        g = jax.nn.sigmoid(mm(feats[i], p["wg"][i]) + p["bg"][i])
        t = mm(feats[i], p["wt"][i]) + p["bt"][i]
        gated.append(g * t)
    combined = jnp.concatenate(gated, axis=-1)
    x = _layernorm_ref(combined, p["ln1"][0], p["ln1"][1])
    h = mm(x, p["w1"]) + p["b1"]
    h = _layernorm_ref(h, p["ln2"][0], p["ln2"][1])
    h = jnp.maximum(h, 0.0)
    h = mm(h, p["w2"]) + p["b2"]
    return _layernorm_ref(h, p["ln3"][0], p["ln3"][1])


if __name__ == "__main__":
    B, S, H = 2, 8, 32          # hidden_size = 32; features flattened to N = B*S rows
    N = B * S
    key = jax.random.PRNGKey(0)
    k_t, k_q, k_a, k_p = jax.random.split(key, 4)

    text = jax.random.normal(k_t, (B, S, H), jnp.float32).reshape(N, H)
    quad = jax.random.normal(k_q, (B, S, H), jnp.float32).reshape(N, H)
    attn = jax.random.normal(k_a, (B, S, H), jnp.float32).reshape(N, H)
    params = init_params(k_p, H)

    out = nonlinear_fusion(text, quad, attn, params)
    out = jax.block_until_ready(out)

    ref = reference(text, quad, attn, params)
    assert out.shape == (N, 3 * H)
    assert jnp.allclose(out, ref, atol=1e-2, rtol=1e-2), "mismatch vs JAX reference"

    print("KERNEL_OK")
</pallas_src>

<mosaic_0001>
module attributes {stable_mosaic.version = 11 : i64} {
  func.func @fusion_kernel(%arg0: i32, %arg1: memref<8x32xbf16, #tpu.memory_space<vmem>>, %arg2: memref<8x32xbf16, #tpu.memory_space<vmem>>, %arg3: memref<8x32xbf16, #tpu.memory_space<vmem>>, %arg4: memref<3x32x256xbf16, #tpu.memory_space<vmem>>, %arg5: memref<3x1x256xf32, #tpu.memory_space<vmem>>, %arg6: memref<2x1x384xf32, #tpu.memory_space<vmem>>, %arg7: memref<384x128xbf16, #tpu.memory_space<vmem>>, %arg8: memref<1x128xf32, #tpu.memory_space<vmem>>, %arg9: memref<2x1x128xf32, #tpu.memory_space<vmem>>, %arg10: memref<128x128xbf16, #tpu.memory_space<vmem>>, %arg11: memref<1x128xf32, #tpu.memory_space<vmem>>, %arg12: memref<2x1x128xf32, #tpu.memory_space<vmem>>, %arg13: memref<8x128xf32, #tpu.memory_space<vmem>>) attributes {dimension_semantics = [#tpu.dimension_semantics<parallel>], iteration_bounds = array<i64: 2>, scalar_prefetch = 0 : i64, scratch_operands = 0 : i64, tpu.core_type = #tpu.core_type<tc>, window_params = [{transform_indices = @transform_0, window_bounds = array<i64: 8, 32>}, {transform_indices = @transform_1, window_bounds = array<i64: 8, 32>}, {transform_indices = @transform_2, window_bounds = array<i64: 8, 32>}, {pipeline_mode = #tpu.pipeline_mode<synchronous>, transform_indices = @transform_3, window_bounds = array<i64: 3, 32, 256>}, {pipeline_mode = #tpu.pipeline_mode<synchronous>, transform_indices = @transform_4, window_bounds = array<i64: 3, 1, 256>}, {pipeline_mode = #tpu.pipeline_mode<synchronous>, transform_indices = @transform_5, window_bounds = array<i64: 2, 1, 384>}, {pipeline_mode = #tpu.pipeline_mode<synchronous>, transform_indices = @transform_6, window_bounds = array<i64: 384, 128>}, {pipeline_mode = #tpu.pipeline_mode<synchronous>, transform_indices = @transform_7, window_bounds = array<i64: 1, 128>}, {pipeline_mode = #tpu.pipeline_mode<synchronous>, transform_indices = @transform_8, window_bounds = array<i64: 2, 1, 128>}, {pipeline_mode = #tpu.pipeline_mode<synchronous>, transform_indices = @transform_9, window_bounds = array<i64: 128, 128>}, {pipeline_mode = #tpu.pipeline_mode<synchronous>, transform_indices = @transform_10, window_bounds = array<i64: 1, 128>}, {pipeline_mode = #tpu.pipeline_mode<synchronous>, transform_indices = @transform_11, window_bounds = array<i64: 2, 1, 128>}, {transform_indices = @transform_12, window_bounds = array<i64: 8, 128>}]} {
    %c0 = arith.constant 0 : index
    %c0_0 = arith.constant 0 : index
    %0 = vector.load %arg1[%c0, %c0_0] : memref<8x32xbf16, #tpu.memory_space<vmem>>, vector<8x32xbf16>
    %c0_1 = arith.constant 0 : index
    %c0_2 = arith.constant 0 : index
    %c0_3 = arith.constant 0 : index
    %1 = vector.load %arg4[%c0_1, %c0_2, %c0_3] : memref<3x32x256xbf16, #tpu.memory_space<vmem>>, vector<1x32x256xbf16>
    %2 = vector.shape_cast %1 : vector<1x32x256xbf16> to vector<32x256xbf16>
    %cst = arith.constant dense<0.000000e+00> : vector<8x256xf32>
    %3 = tpu.matmul %0, %2, %cst {dimension_numbers = #tpu.dot_dimension_numbers<[1], [0], [0], [1], [0, 0, 1, 1], [], []>} : vector<8x32xbf16>, vector<32x256xbf16>, vector<8x256xf32> -> vector<8x256xf32>
    %c0_4 = arith.constant 0 : index
    %c0_5 = arith.constant 0 : index
    %c0_6 = arith.constant 0 : index
    %4 = vector.load %arg5[%c0_4, %c0_5, %c0_6] : memref<3x1x256xf32, #tpu.memory_space<vmem>>, vector<1x1x256xf32>
    %5 = vector.shape_cast %4 : vector<1x1x256xf32> to vector<1x256xf32>
    %6 = vector.broadcast %5 : vector<1x256xf32> to vector<8x256xf32>
    %7 = arith.addf %3, %6 : vector<8x256xf32>
    %8 = vector.extract_strided_slice %7 {offsets = [0, 0], sizes = [8, 128], strides = [1, 1]} : vector<8x256xf32> to vector<8x128xf32>
    %9 = arith.negf %8 : vector<8x128xf32>
    %10 = math.exp %9 : vector<8x128xf32>
    %cst_7 = arith.constant 1.000000e+00 : f32
    %11 = vector.broadcast %cst_7 : f32 to vector<8x128xf32>
    %12 = arith.addf %11, %10 : vector<8x128xf32>
    %13 = arith.divf %11, %12 : vector<8x128xf32>
    %14 = vector.extract_strided_slice %7 {offsets = [0, 128], sizes = [8, 128], strides = [1, 1]} : vector<8x256xf32> to vector<8x128xf32>
    %15 = arith.mulf %13, %14 : vector<8x128xf32>
    %c0_8 = arith.constant 0 : index
    %c0_9 = arith.constant 0 : index
    %16 = vector.load %arg2[%c0_8, %c0_9] : memref<8x32xbf16, #tpu.memory_space<vmem>>, vector<8x32xbf16>
    %c1 = arith.constant 1 : index
    %c0_10 = arith.constant 0 : index
    %c0_11 = arith.constant 0 : index
    %17 = vector.load %arg4[%c1, %c0_10, %c0_11] : memref<3x32x256xbf16, #tpu.memory_space<vmem>>, vector<1x32x256xbf16>
    %18 = vector.shape_cast %17 : vector<1x32x256xbf16> to vector<32x256xbf16>
    %cst_12 = arith.constant dense<0.000000e+00> : vector<8x256xf32>
    %19 = tpu.matmul %16, %18, %cst_12 {dimension_numbers = #tpu.dot_dimension_numbers<[1], [0], [0], [1], [0, 0, 1, 1], [], []>} : vector<8x32xbf16>, vector<32x256xbf16>, vector<8x256xf32> -> vector<8x256xf32>
    %c1_13 = arith.constant 1 : index
    %c0_14 = arith.constant 0 : index
    %c0_15 = arith.constant 0 : index
    %20 = vector.load %arg5[%c1_13, %c0_14, %c0_15] : memref<3x1x256xf32, #tpu.memory_space<vmem>>, vector<1x1x256xf32>
    %21 = vector.shape_cast %20 : vector<1x1x256xf32> to vector<1x256xf32>
    %22 = vector.broadcast %21 : vector<1x256xf32> to vector<8x256xf32>
    %23 = arith.addf %19, %22 : vector<8x256xf32>
    %24 = vector.extract_strided_slice %23 {offsets = [0, 0], sizes = [8, 128], strides = [1, 1]} : vector<8x256xf32> to vector<8x128xf32>
    %25 = arith.negf %24 : vector<8x128xf32>
    %26 = math.exp %25 : vector<8x128xf32>
    %cst_16 = arith.constant 1.000000e+00 : f32
    %27 = vector.broadcast %cst_16 : f32 to vector<8x128xf32>
    %28 = arith.addf %27, %26 : vector<8x128xf32>
    %29 = arith.divf %27, %28 : vector<8x128xf32>
    %30 = vector.extract_strided_slice %23 {offsets = [0, 128], sizes = [8, 128], strides = [1, 1]} : vector<8x256xf32> to vector<8x128xf32>
    %31 = arith.mulf %29, %30 : vector<8x128xf32>
    %c0_17 = arith.constant 0 : index
    %c0_18 = arith.constant 0 : index
    %32 = vector.load %arg3[%c0_17, %c0_18] : memref<8x32xbf16, #tpu.memory_space<vmem>>, vector<8x32xbf16>
    %c2 = arith.constant 2 : index
    %c0_19 = arith.constant 0 : index
    %c0_20 = arith.constant 0 : index
    %33 = vector.load %arg4[%c2, %c0_19, %c0_20] : memref<3x32x256xbf16, #tpu.memory_space<vmem>>, vector<1x32x256xbf16>
    %34 = vector.shape_cast %33 : vector<1x32x256xbf16> to vector<32x256xbf16>
    %cst_21 = arith.constant dense<0.000000e+00> : vector<8x256xf32>
    %35 = tpu.matmul %32, %34, %cst_21 {dimension_numbers = #tpu.dot_dimension_numbers<[1], [0], [0], [1], [0, 0, 1, 1], [], []>} : vector<8x32xbf16>, vector<32x256xbf16>, vector<8x256xf32> -> vector<8x256xf32>
    %c2_22 = arith.constant 2 : index
    %c0_23 = arith.constant 0 : index
    %c0_24 = arith.constant 0 : index
    %36 = vector.load %arg5[%c2_22, %c0_23, %c0_24] : memref<3x1x256xf32, #tpu.memory_space<vmem>>, vector<1x1x256xf32>
    %37 = vector.shape_cast %36 : vector<1x1x256xf32> to vector<1x256xf32>
    %38 = vector.broadcast %37 : vector<1x256xf32> to vector<8x256xf32>
    %39 = arith.addf %35, %38 : vector<8x256xf32>
    %40 = vector.extract_strided_slice %39 {offsets = [0, 0], sizes = [8, 128], strides = [1, 1]} : vector<8x256xf32> to vector<8x128xf32>
    %41 = arith.negf %40 : vector<8x128xf32>
    %42 = math.exp %41 : vector<8x128xf32>
    %cst_25 = arith.constant 1.000000e+00 : f32
    %43 = vector.broadcast %cst_25 : f32 to vector<8x128xf32>
    %44 = arith.addf %43, %42 : vector<8x128xf32>
    %45 = arith.divf %43, %44 : vector<8x128xf32>
    %46 = vector.extract_strided_slice %39 {offsets = [0, 128], sizes = [8, 128], strides = [1, 1]} : vector<8x256xf32> to vector<8x128xf32>
    %47 = arith.mulf %45, %46 : vector<8x128xf32>
    %48 = tpu.concatenate %15, %31, %47 in 1 : vector<8x128xf32>, vector<8x128xf32>, vector<8x128xf32> -> vector<8x384xf32>
    %49 = tpu.iota {dimensions = array<i32: 1>} : vector<1x128xi32>
    %c32_i32 = arith.constant 32 : i32
    %50 = vector.broadcast %c32_i32 : i32 to vector<1x128xi32>
    %51 = arith.cmpi slt, %49, %50 : vector<1x128xi32>
    %52 = arith.extui %51 : vector<1x128xi1> to vector<1x128xi32>
    %53 = arith.sitofp %52 : vector<1x128xi32> to vector<1x128xf32>
    %54 = tpu.concatenate %53, %53, %53 in 1 : vector<1x128xf32>, vector<1x128xf32>, vector<1x128xf32> -> vector<1x384xf32>
    %c0_26 = arith.constant 0 : index
    %c0_27 = arith.constant 0 : index
    %c0_28 = arith.constant 0 : index
    %55 = vector.load %arg6[%c0_26, %c0_27, %c0_28] : memref<2x1x384xf32, #tpu.memory_space<vmem>>, vector<1x1x384xf32>
    %56 = vector.shape_cast %55 : vector<1x1x384xf32> to vector<1x384xf32>
    %c1_29 = arith.constant 1 : index
    %c0_30 = arith.constant 0 : index
    %c0_31 = arith.constant 0 : index
    %57 = vector.load %arg6[%c1_29, %c0_30, %c0_31] : memref<2x1x384xf32, #tpu.memory_space<vmem>>, vector<1x1x384xf32>
    %58 = vector.shape_cast %57 : vector<1x1x384xf32> to vector<1x384xf32>
    %cst_32 = arith.constant dense<0.000000e+00> : vector<8xf32>
    %59 = vector.multi_reduction <add>, %48, %cst_32 [1] : vector<8x384xf32> to vector<8xf32>
    %60 = vector.shape_cast %59 : vector<8xf32> to vector<8x1xf32>
    %cst_33 = arith.constant 9.600000e+01 : f32
    %61 = vector.broadcast %cst_33 : f32 to vector<8x1xf32>
    %62 = arith.divf %60, %61 : vector<8x1xf32>
    %63 = vector.broadcast %62 : vector<8x1xf32> to vector<8x384xf32>
    %64 = arith.subf %48, %63 : vector<8x384xf32>
    %65 = vector.broadcast %54 : vector<1x384xf32> to vector<8x384xf32>
    %66 = arith.mulf %64, %65 : vector<8x384xf32>
    %67 = arith.mulf %66, %66 : vector<8x384xf32>
    %cst_34 = arith.constant dense<0.000000e+00> : vector<8xf32>
    %68 = vector.multi_reduction <add>, %67, %cst_34 [1] : vector<8x384xf32> to vector<8xf32>
    %69 = vector.shape_cast %68 : vector<8xf32> to vector<8x1xf32>
    %cst_35 = arith.constant 9.600000e+01 : f32
    %70 = vector.broadcast %cst_35 : f32 to vector<8x1xf32>
    %71 = arith.divf %69, %70 : vector<8x1xf32>
    %cst_36 = arith.constant 9.99999974E-6 : f32
    %72 = vector.broadcast %cst_36 : f32 to vector<8x1xf32>
    %73 = arith.addf %71, %72 : vector<8x1xf32>
    %74 = math.rsqrt %73 : vector<8x1xf32>
    %75 = vector.broadcast %74 : vector<8x1xf32> to vector<8x384xf32>
    %76 = arith.mulf %66, %75 : vector<8x384xf32>
    %77 = vector.broadcast %56 : vector<1x384xf32> to vector<8x384xf32>
    %78 = arith.mulf %76, %77 : vector<8x384xf32>
    %79 = vector.broadcast %58 : vector<1x384xf32> to vector<8x384xf32>
    %80 = arith.addf %78, %79 : vector<8x384xf32>
    %81 = arith.truncf %80 : vector<8x384xf32> to vector<8x384xbf16>
    %c0_37 = arith.constant 0 : index
    %c0_38 = arith.constant 0 : index
    %82 = vector.load %arg7[%c0_37, %c0_38] : memref<384x128xbf16, #tpu.memory_space<vmem>>, vector<384x128xbf16>
    %cst_39 = arith.constant dense<0.000000e+00> : vector<8x128xf32>
    %83 = tpu.matmul %81, %82, %cst_39 {dimension_numbers = #tpu.dot_dimension_numbers<[1], [0], [0], [1], [0, 0, 1, 1], [], []>} : vector<8x384xbf16>, vector<384x128xbf16>, vector<8x128xf32> -> vector<8x128xf32>
    %c0_40 = arith.constant 0 : index
    %c0_41 = arith.constant 0 : index
    %84 = vector.load %arg8[%c0_40, %c0_41] : memref<1x128xf32, #tpu.memory_space<vmem>>, vector<1x128xf32>
    %85 = vector.broadcast %84 : vector<1x128xf32> to vector<8x128xf32>
    %86 = arith.addf %83, %85 : vector<8x128xf32>
    %c0_42 = arith.constant 0 : index
    %c0_43 = arith.constant 0 : index
    %c0_44 = arith.constant 0 : index
    %87 = vector.load %arg9[%c0_42, %c0_43, %c0_44] : memref<2x1x128xf32, #tpu.memory_space<vmem>>, vector<1x1x128xf32>
    %88 = vector.shape_cast %87 : vector<1x1x128xf32> to vector<1x128xf32>
    %c1_45 = arith.constant 1 : index
    %c0_46 = arith.constant 0 : index
    %c0_47 = arith.constant 0 : index
    %89 = vector.load %arg9[%c1_45, %c0_46, %c0_47] : memref<2x1x128xf32, #tpu.memory_space<vmem>>, vector<1x1x128xf32>
    %90 = vector.shape_cast %89 : vector<1x1x128xf32> to vector<1x128xf32>
    %cst_48 = arith.constant dense<0.000000e+00> : vector<8xf32>
    %91 = vector.multi_reduction <add>, %86, %cst_48 [1] : vector<8x128xf32> to vector<8xf32>
    %92 = vector.shape_cast %91 : vector<8xf32> to vector<8x1xf32>
    %cst_49 = arith.constant 1.280000e+02 : f32
    %93 = vector.broadcast %cst_49 : f32 to vector<8x1xf32>
    %94 = arith.divf %92, %93 : vector<8x1xf32>
    %95 = vector.broadcast %94 : vector<8x1xf32> to vector<8x128xf32>
    %96 = arith.subf %86, %95 : vector<8x128xf32>
    %97 = arith.mulf %96, %96 : vector<8x128xf32>
    %cst_50 = arith.constant dense<0.000000e+00> : vector<8xf32>
    %98 = vector.multi_reduction <add>, %97, %cst_50 [1] : vector<8x128xf32> to vector<8xf32>
    %99 = vector.shape_cast %98 : vector<8xf32> to vector<8x1xf32>
    %cst_51 = arith.constant 1.280000e+02 : f32
    %100 = vector.broadcast %cst_51 : f32 to vector<8x1xf32>
    %101 = arith.divf %99, %100 : vector<8x1xf32>
    %cst_52 = arith.constant 9.99999974E-6 : f32
    %102 = vector.broadcast %cst_52 : f32 to vector<8x1xf32>
    %103 = arith.addf %101, %102 : vector<8x1xf32>
    %104 = math.rsqrt %103 : vector<8x1xf32>
    %105 = vector.broadcast %104 : vector<8x1xf32> to vector<8x128xf32>
    %106 = arith.mulf %96, %105 : vector<8x128xf32>
    %107 = vector.broadcast %88 : vector<1x128xf32> to vector<8x128xf32>
    %108 = arith.mulf %106, %107 : vector<8x128xf32>
    %109 = vector.broadcast %90 : vector<1x128xf32> to vector<8x128xf32>
    %110 = arith.addf %108, %109 : vector<8x128xf32>
    %cst_53 = arith.constant 0.000000e+00 : f32
    %111 = vector.broadcast %cst_53 : f32 to vector<8x128xf32>
    %112 = arith.maximumf %110, %111 : vector<8x128xf32>
    %113 = arith.truncf %112 : vector<8x128xf32> to vector<8x128xbf16>
    %c0_54 = arith.constant 0 : index
    %c0_55 = arith.constant 0 : index
    %114 = vector.load %arg10[%c0_54, %c0_55] : memref<128x128xbf16, #tpu.memory_space<vmem>>, vector<128x128xbf16>
    %cst_56 = arith.constant dense<0.000000e+00> : vector<8x128xf32>
    %115 = tpu.matmul %113, %114, %cst_56 {dimension_numbers = #tpu.dot_dimension_numbers<[1], [0], [0], [1], [0, 0, 1, 1], [], []>} : vector<8x128xbf16>, vector<128x128xbf16>, vector<8x128xf32> -> vector<8x128xf32>
    %c0_57 = arith.constant 0 : index
    %c0_58 = arith.constant 0 : index
    %116 = vector.load %arg11[%c0_57, %c0_58] : memref<1x128xf32, #tpu.memory_space<vmem>>, vector<1x128xf32>
    %117 = vector.broadcast %116 : vector<1x128xf32> to vector<8x128xf32>
    %118 = arith.addf %115, %117 : vector<8x128xf32>
    %119 = tpu.iota {dimensions = array<i32: 1>} : vector<1x128xi32>
    %c96_i32 = arith.constant 96 : i32
    %120 = vector.broadcast %c96_i32 : i32 to vector<1x128xi32>
    %121 = arith.cmpi slt, %119, %120 : vector<1x128xi32>
    %122 = arith.extui %121 : vector<1x128xi1> to vector<1x128xi32>
    %123 = arith.sitofp %122 : vector<1x128xi32> to vector<1x128xf32>
    %c0_59 = arith.constant 0 : index
    %c0_60 = arith.constant 0 : index
    %c0_61 = arith.constant 0 : index
    %124 = vector.load %arg12[%c0_59, %c0_60, %c0_61] : memref<2x1x128xf32, #tpu.memory_space<vmem>>, vector<1x1x128xf32>
    %125 = vector.shape_cast %124 : vector<1x1x128xf32> to vector<1x128xf32>
    %c1_62 = arith.constant 1 : index
    %c0_63 = arith.constant 0 : index
    %c0_64 = arith.constant 0 : index
    %126 = vector.load %arg12[%c1_62, %c0_63, %c0_64] : memref<2x1x128xf32, #tpu.memory_space<vmem>>, vector<1x1x128xf32>
    %127 = vector.shape_cast %126 : vector<1x1x128xf32> to vector<1x128xf32>
    %cst_65 = arith.constant dense<0.000000e+00> : vector<8xf32>
    %128 = vector.multi_reduction <add>, %118, %cst_65 [1] : vector<8x128xf32> to vector<8xf32>
    %129 = vector.shape_cast %128 : vector<8xf32> to vector<8x1xf32>
    %cst_66 = arith.constant 9.600000e+01 : f32
    %130 = vector.broadcast %cst_66 : f32 to vector<8x1xf32>
    %131 = arith.divf %129, %130 : vector<8x1xf32>
    %132 = vector.broadcast %131 : vector<8x1xf32> to vector<8x128xf32>
    %133 = arith.subf %118, %132 : vector<8x128xf32>
    %134 = vector.broadcast %123 : vector<1x128xf32> to vector<8x128xf32>
    %135 = arith.mulf %133, %134 : vector<8x128xf32>
    %136 = arith.mulf %135, %135 : vector<8x128xf32>
    %cst_67 = arith.constant dense<0.000000e+00> : vector<8xf32>
    %137 = vector.multi_reduction <add>, %136, %cst_67 [1] : vector<8x128xf32> to vector<8xf32>
    %138 = vector.shape_cast %137 : vector<8xf32> to vector<8x1xf32>
    %cst_68 = arith.constant 9.600000e+01 : f32
    %139 = vector.broadcast %cst_68 : f32 to vector<8x1xf32>
    %140 = arith.divf %138, %139 : vector<8x1xf32>
    %cst_69 = arith.constant 9.99999974E-6 : f32
    %141 = vector.broadcast %cst_69 : f32 to vector<8x1xf32>
    %142 = arith.addf %140, %141 : vector<8x1xf32>
    %143 = math.rsqrt %142 : vector<8x1xf32>
    %144 = vector.broadcast %143 : vector<8x1xf32> to vector<8x128xf32>
    %145 = arith.mulf %135, %144 : vector<8x128xf32>
    %146 = vector.broadcast %125 : vector<1x128xf32> to vector<8x128xf32>
    %147 = arith.mulf %145, %146 : vector<8x128xf32>
    %148 = vector.broadcast %127 : vector<1x128xf32> to vector<8x128xf32>
    %149 = arith.addf %147, %148 : vector<8x128xf32>
    %c0_70 = arith.constant 0 : index
    %c0_71 = arith.constant 0 : index
    %150 = vector.load %arg13[%c0_70, %c0_71] : memref<8x128xf32, #tpu.memory_space<vmem>>, vector<8x128xf32>
    tpu.vector_store %arg13[%c0_70, %c0_71], %149 {strides = array<i32>} : memref<8x128xf32, #tpu.memory_space<vmem>>, vector<8x128xf32>,
    return
  }
  func.func @transform_0(%arg0: i32) -> (i32, i32) {
    %c0_i32 = arith.constant 0 : i32
    %c0_i32_0 = arith.constant 0 : i32
    return %arg0, %c0_i32 : i32, i32
  }
  func.func @transform_1(%arg0: i32) -> (i32, i32) {
    %c0_i32 = arith.constant 0 : i32
    %c0_i32_0 = arith.constant 0 : i32
    return %arg0, %c0_i32 : i32, i32
  }
  func.func @transform_2(%arg0: i32) -> (i32, i32) {
    %c0_i32 = arith.constant 0 : i32
    %c0_i32_0 = arith.constant 0 : i32
    return %arg0, %c0_i32 : i32, i32
  }
  func.func @transform_3(%arg0: i32) -> (i32, i32, i32) {
    %c0_i32 = arith.constant 0 : i32
    %c0_i32_0 = arith.constant 0 : i32
    %c0_i32_1 = arith.constant 0 : i32
    %c0_i32_2 = arith.constant 0 : i32
    return %c0_i32, %c0_i32_0, %c0_i32_1 : i32, i32, i32
  }
  func.func @transform_4(%arg0: i32) -> (i32, i32, i32) {
    %c0_i32 = arith.constant 0 : i32
    %c0_i32_0 = arith.constant 0 : i32
    %c0_i32_1 = arith.constant 0 : i32
    %c0_i32_2 = arith.constant 0 : i32
    return %c0_i32, %c0_i32_0, %c0_i32_1 : i32, i32, i32
  }
  func.func @transform_5(%arg0: i32) -> (i32, i32, i32) {
    %c0_i32 = arith.constant 0 : i32
    %c0_i32_0 = arith.constant 0 : i32
    %c0_i32_1 = arith.constant 0 : i32
    %c0_i32_2 = arith.constant 0 : i32
    return %c0_i32, %c0_i32_0, %c0_i32_1 : i32, i32, i32
  }
  func.func @transform_6(%arg0: i32) -> (i32, i32) {
    %c0_i32 = arith.constant 0 : i32
    %c0_i32_0 = arith.constant 0 : i32
    %c0_i32_1 = arith.constant 0 : i32
    return %c0_i32, %c0_i32_0 : i32, i32
  }
  func.func @transform_7(%arg0: i32) -> (i32, i32) {
    %c0_i32 = arith.constant 0 : i32
    %c0_i32_0 = arith.constant 0 : i32
    %c0_i32_1 = arith.constant 0 : i32
    return %c0_i32, %c0_i32_0 : i32, i32
  }
  func.func @transform_8(%arg0: i32) -> (i32, i32, i32) {
    %c0_i32 = arith.constant 0 : i32
    %c0_i32_0 = arith.constant 0 : i32
    %c0_i32_1 = arith.constant 0 : i32
    %c0_i32_2 = arith.constant 0 : i32
    return %c0_i32, %c0_i32_0, %c0_i32_1 : i32, i32, i32
  }
  func.func @transform_9(%arg0: i32) -> (i32, i32) {
    %c0_i32 = arith.constant 0 : i32
    %c0_i32_0 = arith.constant 0 : i32
    %c0_i32_1 = arith.constant 0 : i32
    return %c0_i32, %c0_i32_0 : i32, i32
  }
  func.func @transform_10(%arg0: i32) -> (i32, i32) {
    %c0_i32 = arith.constant 0 : i32
    %c0_i32_0 = arith.constant 0 : i32
    %c0_i32_1 = arith.constant 0 : i32
    return %c0_i32, %c0_i32_0 : i32, i32
  }
  func.func @transform_11(%arg0: i32) -> (i32, i32, i32) {
    %c0_i32 = arith.constant 0 : i32
    %c0_i32_0 = arith.constant 0 : i32
    %c0_i32_1 = arith.constant 0 : i32
    %c0_i32_2 = arith.constant 0 : i32
    return %c0_i32, %c0_i32_0, %c0_i32_1 : i32, i32, i32
  }
  func.func @transform_12(%arg0: i32) -> (i32, i32) {
    %c0_i32 = arith.constant 0 : i32
    %c0_i32_0 = arith.constant 0 : i32
    return %arg0, %c0_i32 : i32, i32
  }
}

</mosaic_0001>

<llo_original>
// kernel: tpu_custom_call.1
$region0: #{tpu_custom_call.1}
  #allocation0 [shape = 'u32[]', space=smem, size = 0x4, offset = 0x4, fixed_abs, tag = 'smem constant byte address 0x4 - core index']
  #allocation1 [shape = 'u32[72,128]{1,0:T(1,128)}', space=vmem, size = 0x9000, scoped, tag = 'internal scratch']
  %s0 = inlined_call_operand.hbm [shape: bf16[16,32], index: 0, kind: input, shape index: {}]
  %s1 = inlined_call_operand.hbm [shape: bf16[16,32], index: 1, kind: input, shape index: {}]
  %s2 = inlined_call_operand.hbm [shape: bf16[16,32], index: 2, kind: input, shape index: {}]
  %s3 = inlined_call_operand.hbm [shape: bf16[3,32,256], index: 3, kind: input, shape index: {}]
  %s4 = inlined_call_operand.hbm [shape: f32[3,1,256], index: 4, kind: input, shape index: {}]
  %s5 = inlined_call_operand.hbm [shape: f32[2,1,384], index: 5, kind: input, shape index: {}]
  %s6 = inlined_call_operand.hbm [shape: bf16[384,128], index: 6, kind: input, shape index: {}]
  %s7 = inlined_call_operand.vmem [shape: f32[1,128], index: 7, kind: input, shape index: {}]
  %s8 = inlined_call_operand.vmem [shape: f32[2,1,128], index: 8, kind: input, shape index: {}]
  %s9 = inlined_call_operand.hbm [shape: bf16[128,128], index: 9, kind: input, shape index: {}]
  %s10 = inlined_call_operand.vmem [shape: f32[1,128], index: 10, kind: input, shape index: {}]
  %s11 = inlined_call_operand.vmem [shape: f32[2,1,128], index: 11, kind: input, shape index: {}]
  %s12 = inlined_call_operand.hbm [shape: f32[16,128], index: 12, kind: output, shape index: {}]
  %s13 = sld [smem:[#allocation0]]
  $region113: #{tpu_custom_call.1} parent=0
    _
  %s15 = ssub.s32 1, %s13
  %s16 = scalar_select 0, %s15, %s13
  $region1: #{tpu_custom_call.1} parent=0
    #allocation2 [shape = 'u8[4096]{0}', space=vmem, size = 0x1000, scoped, tag = 'input window, operand 0']
    #allocation3 [shape = 's32[2]{0}', space=sflag, size = 0x8, scoped, tag = 'scoped memory for tpu_custom_call.1']
    #allocation4 [shape = 's32[2]{0}', space=sflag, size = 0x8, scoped, tag = 'scoped memory for tpu_custom_call.1']
    #allocation5 [shape = 'u8[4096]{0}', space=vmem, size = 0x1000, scoped, tag = 'input window, operand 1']
    #allocation6 [shape = 's32[2]{0}', space=sflag, size = 0x8, scoped, tag = 'scoped memory for tpu_custom_call.1']
    #allocation7 [shape = 'u8[4096]{0}', space=vmem, size = 0x1000, scoped, tag = 'input window, operand 2']
    #allocation8 [shape = 'u8[49152]{0}', space=vmem, size = 0xc000, scoped, tag = 'input window, operand 3, single buffered']
    #allocation9 [shape = 's32[1]{0}', space=sflag, size = 0x4, scoped, tag = 'scoped memory for tpu_custom_call.1']
    #allocation10 [shape = 'u8[3072]{0}', space=vmem, size = 0xc00, scoped, tag = 'input window, operand 4, single buffered']
    #allocation11 [shape = 'u8[3072]{0}', space=vmem, size = 0xc00, scoped, tag = 'input window, operand 5, single buffered']
    #allocation12 [shape = 's32[1]{0}', space=sflag, size = 0x4, scoped, tag = 'scoped memory for tpu_custom_call.1']
    #allocation13 [shape = 'u8[98304]{0}', space=vmem, size = 0x18000, scoped, tag = 'input window, operand 6, single buffered']
    #allocation14 [shape = 'u8[32768]{0}', space=vmem, size = 0x8000, scoped, tag = 'input window, operand 9, single buffered']
    #allocation15 [shape = 's32[1]{0}', space=sflag, size = 0x4, scoped, tag = 'scoped memory for tpu_custom_call.1']
    #allocation16 [shape = 'u8[8192]{0}', space=vmem, size = 0x2000, scoped, tag = 'output window, operand 0']
    %17 = vsyncpa [#allocation3], 0
    %s18 = scalar_lea.sflag [#allocation3], 1
    %19 = vsyncpa %s18, 0
    %20 = vsyncpa [#allocation6], 0
    %s21 = scalar_lea.sflag [#allocation6], 1
    %22 = vsyncpa %s21, 0
    %23 = vsyncpa [#allocation9], 0
    %24 = vsyncpa [#allocation12], 0
    %25 = vsyncpa [#allocation15], 0
    %26 = vsyncpa [#allocation4], 0
    %s27 = scalar_lea.sflag [#allocation4], 1
    %28 = vsyncpa %s27, 0
    loop: start=0, step=1, limit=4
    $region2: #{tpu_custom_call.1} parent=1 // loop_pre_header
      _
    $region3: #{tpu_custom_call.1} parent=1 // loop_header
      %s30 = sphi 0, %s34
      %p31 = scmp.ge.s32.totalorder %s30, 4
      %s40 = sphi 0, %s42
      %s43 = sphi 0, %s40
      %s44 = sphi 0, %s43
      %s60 = sphi 0, %s44
      %s66 = sphi 0, %s68
      %s69 = sphi 0, %s66
      %s70 = sphi 0, %s69
      %s86 = sphi 0, %s70
      %s92 = sphi 0, %s94
      %s95 = sphi 0, %s92
      %s96 = sphi 0, %s95
      %s112 = sphi 0, %s96
      %s116 = sphi 0, %s116
      %s118 = sphi 0, %s116
      %s119 = sphi 0, %s118
      %s133 = sphi 0, %s119
      %s137 = sphi 0, %s137
      %s139 = sphi 0, %s137
      %s140 = sphi 0, %s139
      %s154 = sphi 0, %s140
      %s158 = sphi 0, %s158
      %s160 = sphi 0, %s158
      %s161 = sphi 0, %s160
      %s175 = sphi 0, %s161
      %s179 = sphi 0, %s179
      %s181 = sphi 0, %s179
      %s182 = sphi 0, %s181
      %s196 = sphi 0, %s182
      %s200 = sphi 0, %s200
      %s202 = sphi 0, %s200
      %s203 = sphi 0, %s202
      %s217 = sphi 0, %s203
      %s221 = sphi 0, %s221
      %s223 = sphi 0, %s221
      %s224 = sphi 0, %s223
      %s238 = sphi 0, %s224
      %s242 = sphi 0, %s242
      %s244 = sphi 0, %s242
      %s245 = sphi 0, %s244
      %s259 = sphi 0, %s245
      %s263 = sphi 0, %s263
      %s265 = sphi 0, %s263
      %s266 = sphi 0, %s265
      %s280 = sphi 0, %s266
      %s284 = sphi 0, %s284
      %s286 = sphi 0, %s284
      %s287 = sphi 0, %s286
      %s301 = sphi 0, %s287
      %s307 = sphi 0, %s309
      %s310 = sphi 0, %s307
      %s311 = sphi 0, %s310
      %s327 = sphi 0, %s311
    $region4: #{tpu_custom_call.1} parent=1 // loop_header_branch
      %33 = sbr.rel (%p31) target = $region8
    $region5: #{tpu_custom_call.1} parent=1 // loop_body
      %s35 = ssub.s32 %s30, 1
      %s36 = ssub.s32 %s30, 2
      %s37 = sadd.s32 %s30, 1
      %s38 = ssub.s32 %s30, %s37
      %p39 = scmp.eq.s32.totalorder %s38, 0
      %s41 = sadd.s32 %s40, 1
      %s42 = scalar_select %p39, %s40, %s41
      %p45 = pneg %p39
      %p46 = scmp.eq.s32.totalorder %s30, 1
      %p47 = por %p45, %p46
      %p48 = scmp.ne.s32.totalorder %s40, %s43
      %p49 = scmp.eq.s32.totalorder %s30, 0
      %p50 = por %p48, %p49
      %p51 = scmp.ne.s32.totalorder %s40, %s43
      %p52 = scmp.eq.s32.totalorder %s35, 1
      %p53 = por %p51, %p52
      %p54 = scmp.ne.s32.totalorder %s43, %s44
      %p55 = scmp.eq.s32.totalorder %s35, 0
      %p56 = por %p54, %p55
      %p57 = scmp.ne.s32.totalorder %s43, %s44
      %p58 = scmp.eq.s32.totalorder %s36, 1
      %p59 = por %p57, %p58
      %p61 = scmp.ne.s32.totalorder %s44, %s60
      %p62 = scmp.eq.s32.totalorder %s36, 0
      %p63 = por %p61, %p62
      %s64 = ssub.s32 %s30, %s37
      %p65 = scmp.eq.s32.totalorder %s64, 0
      %s67 = sadd.s32 %s66, 1
      %s68 = scalar_select %p65, %s66, %s67
      %p71 = pneg %p65
      %p72 = scmp.eq.s32.totalorder %s30, 1
      %p73 = por %p71, %p72
      %p74 = scmp.ne.s32.totalorder %s66, %s69
      %p75 = scmp.eq.s32.totalorder %s30, 0
      %p76 = por %p74, %p75
      %p77 = scmp.ne.s32.totalorder %s66, %s69
      %p78 = scmp.eq.s32.totalorder %s35, 1
      %p79 = por %p77, %p78
      %p80 = scmp.ne.s32.totalorder %s69, %s70
      %p81 = scmp.eq.s32.totalorder %s35, 0
      %p82 = por %p80, %p81
      %p83 = scmp.ne.s32.totalorder %s69, %s70
      %p84 = scmp.eq.s32.totalorder %s36, 1
      %p85 = por %p83, %p84
      %p87 = scmp.ne.s32.totalorder %s70, %s86
      %p88 = scmp.eq.s32.totalorder %s36, 0
      %p89 = por %p87, %p88
      %s90 = ssub.s32 %s30, %s37
      %p91 = scmp.eq.s32.totalorder %s90, 0
      %s93 = sadd.s32 %s92, 1
      %s94 = scalar_select %p91, %s92, %s93
      %p97 = pneg %p91
      %p98 = scmp.eq.s32.totalorder %s30, 1
      %p99 = por %p97, %p98
      %p100 = scmp.ne.s32.totalorder %s92, %s95
      %p101 = scmp.eq.s32.totalorder %s30, 0
      %p102 = por %p100, %p101
      %p103 = scmp.ne.s32.totalorder %s92, %s95
      %p104 = scmp.eq.s32.totalorder %s35, 1
      %p105 = por %p103, %p104
      %p106 = scmp.ne.s32.totalorder %s95, %s96
      %p107 = scmp.eq.s32.totalorder %s35, 0
      %p108 = por %p106, %p107
      %p109 = scmp.ne.s32.totalorder %s95, %s96
      %p110 = scmp.eq.s32.totalorder %s36, 1
      %p111 = por %p109, %p110
      %p113 = scmp.ne.s32.totalorder %s96, %s112
      %p114 = scmp.eq.s32.totalorder %s36, 0
      %p115 = por %p113, %p114
      %s117 = sadd.s32 %s116, 1
      %p120 = scmp.eq.s32.totalorder %s30, 1
      %p121 = scmp.ne.s32.totalorder %s116, %s118
      %p122 = scmp.eq.s32.totalorder %s30, 0
      %p123 = por %p121, %p122
      %p124 = scmp.ne.s32.totalorder %s116, %s118
      %p125 = scmp.eq.s32.totalorder %s35, 1
      %p126 = por %p124, %p125
      %p127 = scmp.ne.s32.totalorder %s118, %s119
      %p128 = scmp.eq.s32.totalorder %s35, 0
      %p129 = por %p127, %p128
      %p130 = scmp.ne.s32.totalorder %s118, %s119
      %p131 = scmp.eq.s32.totalorder %s36, 1
      %p132 = por %p130, %p131
      %p134 = scmp.ne.s32.totalorder %s119, %s133
      %p135 = scmp.eq.s32.totalorder %s36, 0
      %p136 = por %p134, %p135
      %s138 = sadd.s32 %s137, 1
      %p141 = scmp.eq.s32.totalorder %s30, 1
      %p142 = scmp.ne.s32.totalorder %s137, %s139
      %p143 = scmp.eq.s32.totalorder %s30, 0
      %p144 = por %p142, %p143
      %p145 = scmp.ne.s32.totalorder %s137, %s139
      %p146 = scmp.eq.s32.totalorder %s35, 1
      %p147 = por %p145, %p146
      %p148 = scmp.ne.s32.totalorder %s139, %s140
      %p149 = scmp.eq.s32.totalorder %s35, 0
      %p150 = por %p148, %p149
      %p151 = scmp.ne.s32.totalorder %s139, %s140
      %p152 = scmp.eq.s32.totalorder %s36, 1
      %p153 = por %p151, %p152
      %p155 = scmp.ne.s32.totalorder %s140, %s154
      %p156 = scmp.eq.s32.totalorder %s36, 0
      %p157 = por %p155, %p156
      %s159 = sadd.s32 %s158, 1
      %p162 = scmp.eq.s32.totalorder %s30, 1
      %p163 = scmp.ne.s32.totalorder %s158, %s160
      %p164 = scmp.eq.s32.totalorder %s30, 0
      %p165 = por %p163, %p164
      %p166 = scmp.ne.s32.totalorder %s158, %s160
      %p167 = scmp.eq.s32.totalorder %s35, 1
      %p168 = por %p166, %p167
      %p169 = scmp.ne.s32.totalorder %s160, %s161
      %p170 = scmp.eq.s32.totalorder %s35, 0
      %p171 = por %p169, %p170
      %p172 = scmp.ne.s32.totalorder %s160, %s161
      %p173 = scmp.eq.s32.totalorder %s36, 1
      %p174 = por %p172, %p173
      %p176 = scmp.ne.s32.totalorder %s161, %s175
      %p177 = scmp.eq.s32.totalorder %s36, 0
      %p178 = por %p176, %p177
      %s180 = sadd.s32 %s179, 1
      %p183 = scmp.eq.s32.totalorder %s30, 1
      %p184 = scmp.ne.s32.totalorder %s179, %s181
      %p185 = scmp.eq.s32.totalorder %s30, 0
      %p186 = por %p184, %p185
      %p187 = scmp.ne.s32.totalorder %s179, %s181
      %p188 = scmp.eq.s32.totalorder %s35, 1
      %p189 = por %p187, %p188
      %p190 = scmp.ne.s32.totalorder %s181, %s182
      %p191 = scmp.eq.s32.totalorder %s35, 0
      %p192 = por %p190, %p191
      %p193 = scmp.ne.s32.totalorder %s181, %s182
      %p194 = scmp.eq.s32.totalorder %s36, 1
      %p195 = por %p193, %p194
      %p197 = scmp.ne.s32.totalorder %s182, %s196
      %p198 = scmp.eq.s32.totalorder %s36, 0
      %p199 = por %p197, %p198
      %s201 = sadd.s32 %s200, 1
      %p204 = scmp.eq.s32.totalorder %s30, 1
      %p205 = scmp.ne.s32.totalorder %s200, %s202
      %p206 = scmp.eq.s32.totalorder %s30, 0
      %p207 = por %p205, %p206
      %p208 = scmp.ne.s32.totalorder %s200, %s202
      %p209 = scmp.eq.s32.totalorder %s35, 1
      %p210 = por %p208, %p209
      %p211 = scmp.ne.s32.totalorder %s202, %s203
      %p212 = scmp.eq.s32.totalorder %s35, 0
      %p213 = por %p211, %p212
      %p214 = scmp.ne.s32.totalorder %s202, %s203
      %p215 = scmp.eq.s32.totalorder %s36, 1
      %p216 = por %p214, %p215
      %p218 = scmp.ne.s32.totalorder %s203, %s217
      %p219 = scmp.eq.s32.totalorder %s36, 0
      %p220 = por %p218, %p219
      %s222 = sadd.s32 %s221, 1
      %p225 = scmp.eq.s32.totalorder %s30, 1
      %p226 = scmp.ne.s32.totalorder %s221, %s223
      %p227 = scmp.eq.s32.totalorder %s30, 0
      %p228 = por %p226, %p227
      %p229 = scmp.ne.s32.totalorder %s221, %s223
      %p230 = scmp.eq.s32.totalorder %s35, 1
      %p231 = por %p229, %p230
      %p232 = scmp.ne.s32.totalorder %s223, %s224
      %p233 = scmp.eq.s32.totalorder %s35, 0
      %p234 = por %p232, %p233
      %p235 = scmp.ne.s32.totalorder %s223, %s224
      %p236 = scmp.eq.s32.totalorder %s36, 1
      %p237 = por %p235, %p236
      %p239 = scmp.ne.s32.totalorder %s224, %s238
      %p240 = scmp.eq.s32.totalorder %s36, 0
      %p241 = por %p239, %p240
      %s243 = sadd.s32 %s242, 1
      %p246 = scmp.eq.s32.totalorder %s30, 1
      %p247 = scmp.ne.s32.totalorder %s242, %s244
      %p248 = scmp.eq.s32.totalorder %s30, 0
      %p249 = por %p247, %p248
      %p250 = scmp.ne.s32.totalorder %s242, %s244
      %p251 = scmp.eq.s32.totalorder %s35, 1
      %p252 = por %p250, %p251
      %p253 = scmp.ne.s32.totalorder %s244, %s245
      %p254 = scmp.eq.s32.totalorder %s35, 0
      %p255 = por %p253, %p254
      %p256 = scmp.ne.s32.totalorder %s244, %s245
      %p257 = scmp.eq.s32.totalorder %s36, 1
      %p258 = por %p256, %p257
      %p260 = scmp.ne.s32.totalorder %s245, %s259
      %p261 = scmp.eq.s32.totalorder %s36, 0
      %p262 = por %p260, %p261
      %s264 = sadd.s32 %s263, 1
      %p267 = scmp.eq.s32.totalorder %s30, 1
      %p268 = scmp.ne.s32.totalorder %s263, %s265
      %p269 = scmp.eq.s32.totalorder %s30, 0
      %p270 = por %p268, %p269
      %p271 = scmp.ne.s32.totalorder %s263, %s265
      %p272 = scmp.eq.s32.totalorder %s35, 1
      %p273 = por %p271, %p272
      %p274 = scmp.ne.s32.totalorder %s265, %s266
      %p275 = scmp.eq.s32.totalorder %s35, 0
      %p276 = por %p274, %p275
      %p277 = scmp.ne.s32.totalorder %s265, %s266
      %p278 = scmp.eq.s32.totalorder %s36, 1
      %p279 = por %p277, %p278
      %p281 = scmp.ne.s32.totalorder %s266, %s280
      %p282 = scmp.eq.s32.totalorder %s36, 0
      %p283 = por %p281, %p282
      %s285 = sadd.s32 %s284, 1
      %p288 = scmp.eq.s32.totalorder %s30, 1
      %p289 = scmp.ne.s32.totalorder %s284, %s286
      %p290 = scmp.eq.s32.totalorder %s30, 0
      %p291 = por %p289, %p290
      %p292 = scmp.ne.s32.totalorder %s284, %s286
      %p293 = scmp.eq.s32.totalorder %s35, 1
      %p294 = por %p292, %p293
      %p295 = scmp.ne.s32.totalorder %s286, %s287
      %p296 = scmp.eq.s32.totalorder %s35, 0
      %p297 = por %p295, %p296
      %p298 = scmp.ne.s32.totalorder %s286, %s287
      %p299 = scmp.eq.s32.totalorder %s36, 1
      %p300 = por %p298, %p299
      %p302 = scmp.ne.s32.totalorder %s287, %s301
      %p303 = scmp.eq.s32.totalorder %s36, 0
      %p304 = por %p302, %p303
      %s305 = ssub.s32 %s30, %s37
      %p306 = scmp.eq.s32.totalorder %s305, 0
      %s308 = sadd.s32 %s307, 1
      %s309 = scalar_select %p306, %s307, %s308
      %p312 = pneg %p306
      %p313 = scmp.eq.s32.totalorder %s30, 1
      %p314 = por %p312, %p313
      %p315 = scmp.ne.s32.totalorder %s307, %s310
      %p316 = scmp.eq.s32.totalorder %s30, 0
      %p317 = por %p315, %p316
      %p318 = scmp.ne.s32.totalorder %s307, %s310
      %p319 = scmp.eq.s32.totalorder %s35, 1
      %p320 = por %p318, %p319
      %p321 = scmp.ne.s32.totalorder %s310, %s311
      %p322 = scmp.eq.s32.totalorder %s35, 0
      %p323 = por %p321, %p322
      %p324 = scmp.ne.s32.totalorder %s310, %s311
      %p325 = scmp.eq.s32.totalorder %s36, 1
      %p326 = por %p324, %p325
      %p328 = scmp.ne.s32.totalorder %s311, %s327
      %p329 = scmp.eq.s32.totalorder %s36, 0
      %p330 = por %p328, %p329
      %p331 = scmp.le.s32.totalorder 1, %s30
      %p332 = scmp.lt.s32.totalorder %s30, 3
      %p333 = pnand %p331, %p332
      %p334 = pneg %p333
      // Predicated region
      $region9: #{tpu_custom_call.1} parent=5 // pred_check
        _
      $region10: #{tpu_custom_call.1} parent=5 // pred_check_branch
        %336 = sbr.rel (%p333) target = $region12
      $region11: #{tpu_custom_call.1} parent=5 // pred_region
        %s337 = ssub.s32 %s30, 1
        // Predicated region
        $region13: #{tpu_custom_call.1} parent=11 // pred_check
          %p338 = pneg %p129
        $region14: #{tpu_custom_call.1} parent=11 // pred_check_branch
          %340 = sbr.rel (%p338) target = $region16
        $region15: #{tpu_custom_call.1} parent=11 // pred_region
          %342 = vsyncadd [#allocation9], 0
          %s343 = sshll.u32 %s3, 4
          %s344 = int_to_ptr.hbm [resolvable:$true] %s343
          %s345 = sshll.u32 [#allocation8], 4
          %s346 = int_to_ptr.vmem [resolvable:$true] %s345
          %351 = dma.hbm_to_vmem [thread:$0]  %s344, 1536, %s346, [#allocation9], 128, 128, 8
        $region16: #{tpu_custom_call.1} parent=11 // pred_fallthru
          _
        // Predicated region
        $region17: #{tpu_custom_call.1} parent=11 // pred_check
          %p352 = pneg %p150
        $region18: #{tpu_custom_call.1} parent=11 // pred_check_branch
          %354 = sbr.rel (%p352) target = $region20
        $region19: #{tpu_custom_call.1} parent=11 // pred_region
          %356 = vsyncadd [#allocation9], 0
          %s357 = sshll.u32 %s4, 4
          %s358 = int_to_ptr.hbm [resolvable:$true] %s357
          %s359 = sshll.u32 [#allocation10], 4
          %s360 = int_to_ptr.vmem [resolvable:$true] %s359
          %365 = dma.hbm_to_vmem [thread:$0]  %s358, 96, %s360, [#allocation9], 32, 32, 2
        $region20: #{tpu_custom_call.1} parent=11 // pred_fallthru
          _
        // Predicated region
        $region21: #{tpu_custom_call.1} parent=11 // pred_check
          %p366 = pneg %p171
        $region22: #{tpu_custom_call.1} parent=11 // pred_check_branch
          %368 = sbr.rel (%p366) target = $region24
        $region23: #{tpu_custom_call.1} parent=11 // pred_region
          %370 = vsyncadd [#allocation12], 0
          %s371 = sshll.u32 %s5, 4
          %s372 = int_to_ptr.hbm [resolvable:$true] %s371
          %s373 = sshll.u32 [#allocation11], 4
          %s374 = int_to_ptr.vmem [resolvable:$true] %s373
          %379 = dma.hbm_to_vmem [thread:$0]  %s372, 96, %s374, [#allocation12], 48, 48, 3
        $region24: #{tpu_custom_call.1} parent=11 // pred_fallthru
          _
        // Predicated region
        $region25: #{tpu_custom_call.1} parent=11 // pred_check
          %p380 = pneg %p192
        $region26: #{tpu_custom_call.1} parent=11 // pred_check_branch
          %382 = sbr.rel (%p380) target = $region28
        $region27: #{tpu_custom_call.1} parent=11 // pred_region
          %384 = vsyncadd [#allocation12], 0
          %s385 = sshll.u32 %s6, 4
          %s386 = int_to_ptr.hbm [resolvable:$true] %s385
          %s387 = sshll.u32 [#allocation13], 4
          %s388 = int_to_ptr.vmem [resolvable:$true] %s387
          %393 = dma.hbm_to_vmem [thread:$0]  %s386, 3072, %s388, [#allocation12], 64, 64, 4
        $region28: #{tpu_custom_call.1} parent=11 // pred_fallthru
          _
        // Predicated region
        $region29: #{tpu_custom_call.1} parent=11 // pred_check
          %p394 = pneg %p213
        $region30: #{tpu_custom_call.1} parent=11 // pred_check_branch
          %396 = sbr.rel (%p394) target = $region32
        $region31: #{tpu_custom_call.1} parent=11 // pred_region
          _
        $region32: #{tpu_custom_call.1} parent=11 // pred_fallthru
          _
        // Predicated region
        $region33: #{tpu_custom_call.1} parent=11 // pred_check
          %p397 = pneg %p234
        $region34: #{tpu_custom_call.1} parent=11 // pred_check_branch
          %399 = sbr.rel (%p397) target = $region36
        $region35: #{tpu_custom_call.1} parent=11 // pred_region
          _
        $region36: #{tpu_custom_call.1} parent=11 // pred_fallthru
          _
        // Predicated region
        $region37: #{tpu_custom_call.1} parent=11 // pred_check
          %p400 = pneg %p255
        $region38: #{tpu_custom_call.1} parent=11 // pred_check_branch
          %402 = sbr.rel (%p400) target = $region40
        $region39: #{tpu_custom_call.1} parent=11 // pred_region
          %404 = vsyncadd [#allocation15], 0
          %s405 = sshll.u32 %s9, 4
          %s406 = int_to_ptr.hbm [resolvable:$true] %s405
          %s407 = sshll.u32 [#allocation14], 4
          %s408 = int_to_ptr.vmem [resolvable:$true] %s407
          %413 = dma.hbm_to_vmem [thread:$0]  %s406, 1024, %s408, [#allocation15], 64, 64, 4
        $region40: #{tpu_custom_call.1} parent=11 // pred_fallthru
          _
        // Predicated region
        $region41: #{tpu_custom_call.1} parent=11 // pred_check
          %p414 = pneg %p276
        $region42: #{tpu_custom_call.1} parent=11 // pred_check_branch
          %416 = sbr.rel (%p414) target = $region44
        $region43: #{tpu_custom_call.1} parent=11 // pred_region
          _
        $region44: #{tpu_custom_call.1} parent=11 // pred_fallthru
          _
        // Predicated region
        $region45: #{tpu_custom_call.1} parent=11 // pred_check
          %p417 = pneg %p297
        $region46: #{tpu_custom_call.1} parent=11 // pred_check_branch
          %419 = sbr.rel (%p417) target = $region48
        $region47: #{tpu_custom_call.1} parent=11 // pred_region
          _
        $region48: #{tpu_custom_call.1} parent=11 // pred_fallthru
          _
      $region12: #{tpu_custom_call.1} parent=5 // pred_fallthru
        _
      %p420 = scmp.lt.s32.totalorder %s30, 2
      // Predicated region
      $region49: #{tpu_custom_call.1} parent=5 // pred_check
        %p421 = pneg %p420
      $region50: #{tpu_custom_call.1} parent=5 // pred_check_branch
        %423 = sbr.rel (%p421) target = $region52
      $region51: #{tpu_custom_call.1} parent=5 // pred_region
        // Predicated region
        $region53: #{tpu_custom_call.1} parent=51 // pred_check
          %p424 = pneg %p50
        $region54: #{tpu_custom_call.1} parent=51 // pred_check_branch
          %426 = sbr.rel (%p424) target = $region56
        $region55: #{tpu_custom_call.1} parent=51 // pred_region
          %s427 = sand.u32 %s40, 1
          %s428 = scalar_lea.sflag [#allocation3], %s427
          %s429 = sand.u32 %s40, 1
          %s430 = smul.addr %s429, 4
          %s431 = scalar_lea.vmem [#allocation2], %s430
          %433 = vsyncadd %s428, 0
          %s434 = smul.addr %s30, 4
          %s435 = scalar_lea.hbm %s0, %s434
          %s437 = sshll.u32 %s435, 4
          %s438 = int_to_ptr.hbm [resolvable:$true] %s437
          %s439 = sshll.u32 %s431, 4
          %s440 = int_to_ptr.vmem [resolvable:$true] %s439
          %442 = dma.hbm_to_vmem [thread:$0]  %s438, 64, %s440, %s428
        $region56: #{tpu_custom_call.1} parent=51 // pred_fallthru
          _
        // Predicated region
        $region57: #{tpu_custom_call.1} parent=51 // pred_check
          %p443 = pneg %p76
        $region58: #{tpu_custom_call.1} parent=51 // pred_check_branch
          %445 = sbr.rel (%p443) target = $region60
        $region59: #{tpu_custom_call.1} parent=51 // pred_region
          %s446 = sand.u32 %s30, 1
          %s447 = scalar_lea.sflag [#allocation6], %s446
          %s448 = sand.u32 %s66, 1
          %s449 = smul.addr %s448, 4
          %s450 = scalar_lea.vmem [#allocation5], %s449
          %452 = vsyncadd %s447, 0
          %s453 = smul.addr %s30, 4
          %s454 = scalar_lea.hbm %s1, %s453
          %s456 = sshll.u32 %s454, 4
          %s457 = int_to_ptr.hbm [resolvable:$true] %s456
          %s458 = sshll.u32 %s450, 4
          %s459 = int_to_ptr.vmem [resolvable:$true] %s458
          %461 = dma.hbm_to_vmem [thread:$0]  %s457, 64, %s459, %s447
        $region60: #{tpu_custom_call.1} parent=51 // pred_fallthru
          _
        // Predicated region
        $region61: #{tpu_custom_call.1} parent=51 // pred_check
          %p462 = pneg %p102
        $region62: #{tpu_custom_call.1} parent=51 // pred_check_branch
          %464 = sbr.rel (%p462) target = $region64
        $region63: #{tpu_custom_call.1} parent=51 // pred_region
          %s465 = sand.u32 %s30, 1
          %s466 = scalar_lea.sflag [#allocation6], %s465
          %s467 = sand.u32 %s92, 1
          %s468 = smul.addr %s467, 4
          %s469 = scalar_lea.vmem [#allocation7], %s468
          %471 = vsyncadd %s466, 0
          %s472 = smul.addr %s30, 4
          %s473 = scalar_lea.hbm %s2, %s472
          %s475 = sshll.u32 %s473, 4
          %s476 = int_to_ptr.hbm [resolvable:$true] %s475
          %s477 = sshll.u32 %s469, 4
          %s478 = int_to_ptr.vmem [resolvable:$true] %s477
          %480 = dma.hbm_to_vmem [thread:$0]  %s476, 64, %s478, %s466
        $region64: #{tpu_custom_call.1} parent=51 // pred_fallthru
          _
      $region52: #{tpu_custom_call.1} parent=5 // pred_fallthru
        _
      %p481 = scmp.le.s32.totalorder 1, %s30
      %p482 = scmp.lt.s32.totalorder %s30, 3
      %p483 = pnand %p481, %p482
      %p484 = pneg %p483
      // Predicated region
      $region65: #{tpu_custom_call.1} parent=5 // pred_check
        _
      $region66: #{tpu_custom_call.1} parent=5 // pred_check_branch
        %486 = sbr.rel (%p483) target = $region68
      $region67: #{tpu_custom_call.1} parent=5 // pred_region
        %s487 = ssub.s32 %s30, 1
        %s488 = sand.u32 %s43, 1
        %s489 = scalar_lea.sflag [#allocation3], %s488
        %s490 = sand.u32 %s43, 1
        %s491 = smul.addr %s490, 4
        %s492 = scalar_lea.vmem [#allocation2], %s491
        // Predicated region
        $region69: #{tpu_custom_call.1} parent=67 // pred_check
          %p493 = pneg %p56
        $region70: #{tpu_custom_call.1} parent=67 // pred_check_branch
          %495 = sbr.rel (%p493) target = $region72
        $region71: #{tpu_custom_call.1} parent=67 // pred_region
          %497 = dma.done %s489, 64
        $region72: #{tpu_custom_call.1} parent=67 // pred_fallthru
          _
        %s498 = sand.u32 %s35, 1
        %s499 = scalar_lea.sflag [#allocation6], %s498
        %s500 = sand.u32 %s69, 1
        %s501 = smul.addr %s500, 4
        %s502 = scalar_lea.vmem [#allocation5], %s501
        // Predicated region
        $region73: #{tpu_custom_call.1} parent=67 // pred_check
          %p503 = pneg %p82
        $region74: #{tpu_custom_call.1} parent=67 // pred_check_branch
          %505 = sbr.rel (%p503) target = $region76
        $region75: #{tpu_custom_call.1} parent=67 // pred_region
          %507 = dma.done %s499, 64
        $region76: #{tpu_custom_call.1} parent=67 // pred_fallthru
          _
        %s508 = sand.u32 %s35, 1
        %s509 = scalar_lea.sflag [#allocation6], %s508
        %s510 = sand.u32 %s95, 1
        %s511 = smul.addr %s510, 4
        %s512 = scalar_lea.vmem [#allocation7], %s511
        // Predicated region
        $region77: #{tpu_custom_call.1} parent=67 // pred_check
          %p513 = pneg %p108
        $region78: #{tpu_custom_call.1} parent=67 // pred_check_branch
          %515 = sbr.rel (%p513) target = $region80
        $region79: #{tpu_custom_call.1} parent=67 // pred_region
          %517 = dma.done %s509, 64
        $region80: #{tpu_custom_call.1} parent=67 // pred_fallthru
          _
        // Predicated region
        $region81: #{tpu_custom_call.1} parent=67 // pred_check
          %p518 = pneg %p129
        $region82: #{tpu_custom_call.1} parent=67 // pred_check_branch
          %520 = sbr.rel (%p518) target = $region84
        $region83: #{tpu_custom_call.1} parent=67 // pred_region
          %522 = dma.done [#allocation9], 1536
        $region84: #{tpu_custom_call.1} parent=67 // pred_fallthru
          _
        // Predicated region
        $region85: #{tpu_custom_call.1} parent=67 // pred_check
          %p523 = pneg %p150
        $region86: #{tpu_custom_call.1} parent=67 // pred_check_branch
          %525 = sbr.rel (%p523) target = $region88
        $region87: #{tpu_custom_call.1} parent=67 // pred_region
          %527 = dma.done [#allocation9], 96
        $region88: #{tpu_custom_call.1} parent=67 // pred_fallthru
          _
        // Predicated region
        $region89: #{tpu_custom_call.1} parent=67 // pred_check
          %p528 = pneg %p171
        $region90: #{tpu_custom_call.1} parent=67 // pred_check_branch
          %530 = sbr.rel (%p528) target = $region92
        $region91: #{tpu_custom_call.1} parent=67 // pred_region
          %532 = dma.done [#allocation12], 96
        $region92: #{tpu_custom_call.1} parent=67 // pred_fallthru
          _
        // Predicated region
        $region93: #{tpu_custom_call.1} parent=67 // pred_check
          %p533 = pneg %p192
        $region94: #{tpu_custom_call.1} parent=67 // pred_check_branch
          %535 = sbr.rel (%p533) target = $region96
        $region95: #{tpu_custom_call.1} parent=67 // pred_region
          %537 = dma.done [#allocation12], 3072
        $region96: #{tpu_custom_call.1} parent=67 // pred_fallthru
          _
        // Predicated region
        $region97: #{tpu_custom_call.1} parent=67 // pred_check
          %p538 = pneg %p255
        $region98: #{tpu_custom_call.1} parent=67 // pred_check_branch
          %540 = sbr.rel (%p538) target = $region100
        $region99: #{tpu_custom_call.1} parent=67 // pred_region
          %542 = dma.done [#allocation15], 1024
        $region100: #{tpu_custom_call.1} parent=67 // pred_fallthru
          _
        %s543 = sand.u32 %s43, 1
        %s544 = scalar_lea.sflag [#allocation3], %s543
        %s545 = sand.u32 %s43, 1
        %s546 = smul.addr %s545, 4
        %s547 = scalar_lea.vmem [#allocation2], %s546
        %p548 = pneg %p56
        %p549 = pneg %p53
        %s550 = sand.u32 %s35, 1
        %s551 = scalar_lea.sflag [#allocation6], %s550
        %s552 = sand.u32 %s69, 1
        %s553 = smul.addr %s552, 4
        %s554 = scalar_lea.vmem [#allocation5], %s553
        %p555 = pneg %p82
        %p556 = pneg %p79
        %s557 = sand.u32 %s35, 1
        %s558 = scalar_lea.sflag [#allocation6], %s557
        %s559 = sand.u32 %s95, 1
        %s560 = smul.addr %s559, 4
        %s561 = scalar_lea.vmem [#allocation7], %s560
        %p562 = pneg %p108
        %p563 = pneg %p105
        %p564 = pneg %p129
        %p565 = pneg %p126
        %p566 = pneg %p150
        %p567 = pneg %p147
        %p568 = pneg %p171
        %p569 = pneg %p168
        %p570 = pneg %p192
        %p571 = pneg %p189
        %p572 = pneg %p213
        %p573 = pneg %p210
        %p574 = pneg %p234
        %p575 = pneg %p231
        %p576 = pneg %p255
        %p577 = pneg %p252
        %p578 = pneg %p276
        %p579 = pneg %p273
        %p580 = pneg %p297
        %p581 = pneg %p294
        %p582 = pneg %p323
        %p583 = pneg %p320
        %s584 = sand.u32 %s310, 1
        %s585 = scalar_lea.sflag [#allocation4], %s584
        %s586 = sand.u32 %s310, 1
        %s587 = smul.addr %s586, 8
        %s588 = scalar_lea.vmem [#allocation16], %s587
        %v590 = vld [vmem:[%s492] sm:$0xf]
        %v591 = vld [vmem:[#allocation8] sm:$0xff]
        %v592 = vld [vmem:[#allocation8 + $0x8] sm:$0xff]
        %v593 = vld [vmem:[#allocation8 + $0x10] sm:$0xff]
        %v594 = vld [vmem:[#allocation8 + $0x18] sm:$0xff]
        %v595 = vld [vmem:[#allocation10] sm:$0x3]
        %v597 = vperm.slane %v595, 0
        %v598 = vperm.slane %v595, 1
        %v605 = vunpack.c.l.b16 %v591
        %v606 = vunpack.c.h.b16 %v591
        %v607 = vunpack.c.l.b16 %v592
        %v608 = vunpack.c.h.b16 %v592
        %v609 = vunpack.c.l.b16 %v593
        %v610 = vunpack.c.h.b16 %v593
        %v611 = vunpack.c.l.b16 %v594
        %v612 = vunpack.c.h.b16 %v594
        %v613 = vpack.c.b16 %v607, %v605
        %v614 = vpack.c.b16 %v608, %v606
        %v615 = vpack.c.b16 %v611, %v609
        %v616 = vpack.c.b16 %v612, %v610
        %vm621 = vcmask 261120
        %v623 = vsel %vm621, %v590, 0
        %625 = vmatpush.bf16.msra.mxu0 0
        %626 = vmatpush.bf16.msra.mxu0 0
        %627 = vmatpush.bf16.msra.mxu0 0
        %628 = vmatpush.bf16.msra.mxu0 0
        %629 = vmatpush.bf16.msra.mxu0 0
        %630 = vmatpush.bf16.msra.mxu0 0
        %631 = vmatpush.bf16.msra.mxu0 %v615
        %632 = vmatpush.bf16.msra.mxu0 %v613
        %633 = vmatmul.bf16.gmra.mxu0 %v623
        %v634 = vpop.f32.mrf.mxu0
        %v635 = vadd.f32 %v597, %v634
        %v636 = vpop.f32.mrf.mxu0
        %637 = vdwg.mxu0
        %638 = vmatpush.bf16.msra.mxu0 0
        %639 = vmatpush.bf16.msra.mxu0 0
        %640 = vmatpush.bf16.msra.mxu0 0
        %641 = vmatpush.bf16.msra.mxu0 0
        %642 = vmatpush.bf16.msra.mxu0 0
        %643 = vmatpush.bf16.msra.mxu0 0
        %644 = vmatpush.bf16.msra.mxu0 %v616
        %645 = vmatpush.bf16.msra.mxu0 %v614
        %646 = vmatmul.bf16.gmra.mxu0 %v623
        %v647 = vpop.f32.mrf.mxu0
        %v648 = vadd.f32 %v598, %v647
        %v649 = vpop.f32.mrf.mxu0
        %650 = vdwg.mxu0
        %v651 = vxor.u32 %v635, 2147483648
        %v652 = vmul.f32 %v651, 1.442695
        %v653 = vpow.pop %v652
        %v654 = vadd.f32 %v653, 1.0
        %v655 = vrcp.pop %v654
        %v656 = vmul.f32 %v654, %v655
        %v657 = vsub.f32 1.0, %v656
        %v658 = vmul.f32 %v655, %v657
        %v659 = vadd.f32 %v655, %v658
        %vm660 = vweird.f32 %v654
        %vm661 = vweird.f32 %v655
        %vm662 = vmor %vm660, %vm661
        %v663 = vsel %vm662, %v655, %v659
        %v664 = vand.u32 2147483647, %v654
        %vm665 = vcmp.eq.f32.partialorder %v664, 8.507059e+37
        %v666 = vand.u32 %v654, 2147483648
        %v667 = vor.u32 1.1754944e-38, %v666
        %v668 = vsel %vm665, %v667, %v663
        %v669 = vmul.f32 1.0, %v668
        %v670 = vmul.f32 %v669, %v648
        %v671 = vld [vmem:[%s502] sm:$0xf]
        %s672 = scalar_lea.vmem [#allocation8], 32
        %v673 = vld [vmem:[%s672] sm:$0xff]
        %v674 = vld [vmem:[%s672 + $0x8] sm:$0xff]
        %v675 = vld [vmem:[%s672 + $0x10] sm:$0xff]
        %v676 = vld [vmem:[%s672 + $0x18] sm:$0xff]
        %s677 = scalar_lea.vmem [#allocation10], 2
        %v678 = vld [vmem:[%s677] sm:$0x3]
        %v680 = vperm.slane %v678, 0
        %v681 = vperm.slane %v678, 1
        %v688 = vunpack.c.l.b16 %v673
        %v689 = vunpack.c.h.b16 %v673
        %v690 = vunpack.c.l.b16 %v674
        %v691 = vunpack.c.h.b16 %v674
        %v692 = vunpack.c.l.b16 %v675
        %v693 = vunpack.c.h.b16 %v675
        %v694 = vunpack.c.l.b16 %v676
        %v695 = vunpack.c.h.b16 %v676
        %v696 = vpack.c.b16 %v690, %v688
        %v697 = vpack.c.b16 %v691, %v689
        %v698 = vpack.c.b16 %v694, %v692
        %v699 = vpack.c.b16 %v695, %v693
        %v705 = vsel %vm621, %v671, 0
        %707 = vmatpush.bf16.msra.mxu0 0
        %708 = vmatpush.bf16.msra.mxu0 0
        %709 = vmatpush.bf16.msra.mxu0 0
        %710 = vmatpush.bf16.msra.mxu0 0
        %711 = vmatpush.bf16.msra.mxu0 0
        %712 = vmatpush.bf16.msra.mxu0 0
        %713 = vmatpush.bf16.msra.mxu0 %v698
        %714 = vmatpush.bf16.msra.mxu0 %v696
        %715 = vmatmul.bf16.gmra.mxu0 %v705
        %v716 = vpop.f32.mrf.mxu0
        %v717 = vadd.f32 %v680, %v716
        %v718 = vpop.f32.mrf.mxu0
        %719 = vdwg.mxu0
        %720 = vmatpush.bf16.msra.mxu0 0
        %721 = vmatpush.bf16.msra.mxu0 0
        %722 = vmatpush.bf16.msra.mxu0 0
        %723 = vmatpush.bf16.msra.mxu0 0
        %724 = vmatpush.bf16.msra.mxu0 0
        %725 = vmatpush.bf16.msra.mxu0 0
        %726 = vmatpush.bf16.msra.mxu0 %v699
        %727 = vmatpush.bf16.msra.mxu0 %v697
        %728 = vmatmul.bf16.gmra.mxu0 %v705
        %v729 = vpop.f32.mrf.mxu0
        %v730 = vadd.f32 %v681, %v729
        %v731 = vpop.f32.mrf.mxu0
        %732 = vdwg.mxu0
        %v733 = vxor.u32 %v717, 2147483648
        %v734 = vmul.f32 %v733, 1.442695
        %v735 = vpow.pop %v734
        %v736 = vadd.f32 %v735, 1.0
        %v737 = vrcp.pop %v736
        %v738 = vmul.f32 %v736, %v737
        %v739 = vsub.f32 1.0, %v738
        %v740 = vmul.f32 %v737, %v739
        %v741 = vadd.f32 %v737, %v740
        %vm742 = vweird.f32 %v736
        %vm743 = vweird.f32 %v737
        %vm744 = vmor %vm742, %vm743
        %v745 = vsel %vm744, %v737, %v741
        %v746 = vand.u32 2147483647, %v736
        %vm747 = vcmp.eq.f32.partialorder %v746, 8.507059e+37
        %v748 = vand.u32 %v736, 2147483648
        %v749 = vor.u32 1.1754944e-38, %v748
        %v750 = vsel %vm747, %v749, %v745
        %v751 = vmul.f32 1.0, %v750
        %v752 = vmul.f32 %v751, %v730
        %v753 = vld [vmem:[%s512] sm:$0xf]
        %s754 = scalar_lea.vmem [#allocation8], 64
        %v755 = vld [vmem:[%s754] sm:$0xff]
        %v756 = vld [vmem:[%s754 + $0x8] sm:$0xff]
        %v757 = vld [vmem:[%s754 + $0x10] sm:$0xff]
        %v758 = vld [vmem:[%s754 + $0x18] sm:$0xff]
        %s759 = scalar_lea.vmem [#allocation10], 4
        %v760 = vld [vmem:[%s759] sm:$0x3]
        %v762 = vperm.slane %v760, 0
        %v763 = vperm.slane %v760, 1
        %v770 = vunpack.c.l.b16 %v755
        %v771 = vunpack.c.h.b16 %v755
        %v772 = vunpack.c.l.b16 %v756
        %v773 = vunpack.c.h.b16 %v756
        %v774 = vunpack.c.l.b16 %v757
        %v775 = vunpack.c.h.b16 %v757
        %v776 = vunpack.c.l.b16 %v758
        %v777 = vunpack.c.h.b16 %v758
        %v778 = vpack.c.b16 %v772, %v770
        %v779 = vpack.c.b16 %v773, %v771
        %v780 = vpack.c.b16 %v776, %v774
        %v781 = vpack.c.b16 %v777, %v775
        %v787 = vsel %vm621, %v753, 0
        %789 = vmatpush.bf16.msra.mxu0 0
        %790 = vmatpush.bf16.msra.mxu0 0
        %791 = vmatpush.bf16.msra.mxu0 0
        %792 = vmatpush.bf16.msra.mxu0 0
        %793 = vmatpush.bf16.msra.mxu0 0
        %794 = vmatpush.bf16.msra.mxu0 0
        %795 = vmatpush.bf16.msra.mxu0 %v780
        %796 = vmatpush.bf16.msra.mxu0 %v778
        %797 = vmatmul.bf16.gmra.mxu0 %v787
        %v798 = vpop.f32.mrf.mxu0
        %v799 = vadd.f32 %v762, %v798
        %v800 = vpop.f32.mrf.mxu0
        %801 = vdwg.mxu0
        %802 = vmatpush.bf16.msra.mxu0 0
        %803 = vmatpush.bf16.msra.mxu0 0
        %804 = vmatpush.bf16.msra.mxu0 0
        %805 = vmatpush.bf16.msra.mxu0 0
        %806 = vmatpush.bf16.msra.mxu0 0
        %807 = vmatpush.bf16.msra.mxu0 0
        %808 = vmatpush.bf16.msra.mxu0 %v781
        %809 = vmatpush.bf16.msra.mxu0 %v779
        %810 = vmatmul.bf16.gmra.mxu0 %v787
        %v811 = vpop.f32.mrf.mxu0
        %v812 = vadd.f32 %v763, %v811
        %v813 = vpop.f32.mrf.mxu0
        %814 = vdwg.mxu0
        %v815 = vxor.u32 %v799, 2147483648
        %v816 = vmul.f32 %v815, 1.442695
        %v817 = vpow.pop %v816
        %v818 = vadd.f32 %v817, 1.0
        %v819 = vrcp.pop %v818
        %v820 = vmul.f32 %v818, %v819
        %v821 = vsub.f32 1.0, %v820
        %v822 = vmul.f32 %v819, %v821
        %v823 = vadd.f32 %v819, %v822
        %vm824 = vweird.f32 %v818
        %vm825 = vweird.f32 %v819
        %vm826 = vmor %vm824, %vm825
        %v827 = vsel %vm826, %v819, %v823
        %v828 = vand.u32 2147483647, %v818
        %vm829 = vcmp.eq.f32.partialorder %v828, 8.507059e+37
        %v830 = vand.u32 %v818, 2147483648
        %v831 = vor.u32 1.1754944e-38, %v830
        %v832 = vsel %vm829, %v831, %v827
        %v833 = vmul.f32 1.0, %v832
        %v834 = vmul.f32 %v833, %v812
        %v835 = vlaneseq
        %v836 = vand.u32 %v835, 127
        %vm837 = vcmp.lt.s32.totalorder %v836, 32
        %v838 = vsel %vm837, 1, 0
        %v839 = vcvt.s32.f32 %v838
        %v840 = vld [vmem:[#allocation11] sm:$0x7]
        %s841 = scalar_lea.vmem [#allocation11], 3
        %v842 = vld [vmem:[%s841] sm:$0x7]
        %v843 = vadd.f32 %v670, %v752
        %v844 = vadd.f32 %v843, %v834
        %845 = vadd.xlane.f32.xlu0 %v844
        %v846 = vpop.xlane.xlu0 %845
        %v847 = vrcp.pop 96.0
        %v848 = vmul.f32 96.0, %v847
        %v849 = vsub.f32 1.0, %v848
        %v850 = vmul.f32 %v847, %v849
        %v851 = vadd.f32 %v847, %v850
        %vm852 = vweird.f32 %v847
        %v853 = vsel %vm852, %v847, %v851
        %v854 = vmul.f32 %v846, %v853
        %v855 = vsub.f32 %v670, %v854
        %v856 = vsub.f32 %v752, %v854
        %v857 = vsub.f32 %v834, %v854
        %v858 = vperm.slane %v839, 0
        %v859 = vmul.f32 %v855, %v858
        %v860 = vmul.f32 %v856, %v858
        %v861 = vmul.f32 %v857, %v858
        %v862 = vmul.f32 %v859, %v859
        %v863 = vmul.f32 %v860, %v860
        %v864 = vmul.f32 %v861, %v861
        %v865 = vadd.f32 %v862, %v863
        %v866 = vadd.f32 %v865, %v864
        %867 = vadd.xlane.f32.xlu0 %v866
        %v868 = vpop.xlane.xlu0 %867
        %v869 = vmul.f32 %v868, %v853
        %v870 = vadd.f32 %v869, 1e-05
        %v871 = vrsqrt.pop %v870
        %v872 = vmul.f32 %v871, %v870
        %v873 = vmul.f32 %v872, %v871
        %v874 = vmul.f32 0.5, %v873
        %v875 = vsub.f32 1.5, %v874
        %v876 = vmul.f32 %v871, %v875
        %vm877 = vweird.f32 %v870
        %vm878 = vweird.f32 %v871
        %vm879 = vmor %vm877, %vm878
        %v880 = vsel %vm879, %v871, %v876
        %v881 = vmul.f32 %v859, %v880
        %v882 = vmul.f32 %v860, %v880
        %v883 = vmul.f32 %v861, %v880
        %v885 = vperm.slane %v840, 0
        %v886 = vperm.slane %v840, 1
        %v887 = vperm.slane %v840, 2
        %v891 = vmul.f32 %v881, %v885
        %v892 = vmul.f32 %v882, %v886
        %v893 = vmul.f32 %v883, %v887
        %v895 = vperm.slane %v842, 0
        %v896 = vperm.slane %v842, 1
        %v897 = vperm.slane %v842, 2
        %v901 = vadd.f32 %v891, %v895
        %v902 = vadd.f32 %v892, %v896
        %v903 = vadd.f32 %v893, %v897
        %v904 = vpack.c.bf16 %v901, %v901
        %v905 = vpack.c.bf16 %v902, %v902
        %v906 = vpack.c.bf16 %v903, %v903
        %v907 = vld [vmem:[#allocation13] sm:$0xf]
        %v908 = vld [vmem:[#allocation13 + $0x4] sm:$0xf]
        %v909 = vld [vmem:[#allocation13 + $0x8] sm:$0xf]
        %v910 = vld [vmem:[#allocation13 + $0xc] sm:$0xf]
        %v911 = vld [vmem:[#allocation13 + $0x10] sm:$0xf]
        %v912 = vld [vmem:[#allocation13 + $0x14] sm:$0xf]
        %v913 = vld [vmem:[#allocation13 + $0x18] sm:$0xf]
        %v914 = vld [vmem:[#allocation13 + $0x1c] sm:$0xf]
        %v915 = vld [vmem:[#allocation13 + $0x20] sm:$0xf]
        %v916 = vld [vmem:[#allocation13 + $0x24] sm:$0xf]
        %v917 = vld [vmem:[#allocation13 + $0x28] sm:$0xf]
        %v918 = vld [vmem:[#allocation13 + $0x2c] sm:$0xf]
        %v919 = vld [vmem:[#allocation13 + $0x30] sm:$0xf]
        %v920 = vld [vmem:[#allocation13 + $0x34] sm:$0xf]
        %v921 = vld [vmem:[#allocation13 + $0x38] sm:$0xf]
        %v922 = vld [vmem:[#allocation13 + $0x3c] sm:$0xf]
        %v923 = vld [vmem:[#allocation13 + $0x40] sm:$0xf]
        %v924 = vld [vmem:[#allocation13 + $0x44] sm:$0xf]
        %v925 = vld [vmem:[#allocation13 + $0x48] sm:$0xf]
        %v926 = vld [vmem:[#allocation13 + $0x4c] sm:$0xf]
        %v927 = vld [vmem:[#allocation13 + $0x50] sm:$0xf]
        %v928 = vld [vmem:[#allocation13 + $0x54] sm:$0xf]
        %v929 = vld [vmem:[#allocation13 + $0x58] sm:$0xf]
        %v930 = vld [vmem:[#allocation13 + $0x5c] sm:$0xf]
        %v931 = vld [vmem:[#allocation13 + $0x60] sm:$0xf]
        %v932 = vld [vmem:[#allocation13 + $0x64] sm:$0xf]
        %v933 = vld [vmem:[#allocation13 + $0x68] sm:$0xf]
        %v934 = vld [vmem:[#allocation13 + $0x6c] sm:$0xf]
        %v935 = vld [vmem:[#allocation13 + $0x70] sm:$0xf]
        %v936 = vld [vmem:[#allocation13 + $0x74] sm:$0xf]
        %v937 = vld [vmem:[#allocation13 + $0x78] sm:$0xf]
        %v938 = vld [vmem:[#allocation13 + $0x7c] sm:$0xf]
        %v939 = vld [vmem:[#allocation13 + $0x80] sm:$0xf]
        %v940 = vld [vmem:[#allocation13 + $0x84] sm:$0xf]
        %v941 = vld [vmem:[#allocation13 + $0x88] sm:$0xf]
        %v942 = vld [vmem:[#allocation13 + $0x8c] sm:$0xf]
        %v943 = vld [vmem:[#allocation13 + $0x90] sm:$0xf]
        %v944 = vld [vmem:[#allocation13 + $0x94] sm:$0xf]
        %v945 = vld [vmem:[#allocation13 + $0x98] sm:$0xf]
        %v946 = vld [vmem:[#allocation13 + $0x9c] sm:$0xf]
        %v947 = vld [vmem:[#allocation13 + $0xa0] sm:$0xf]
        %v948 = vld [vmem:[#allocation13 + $0xa4] sm:$0xf]
        %v949 = vld [vmem:[#allocation13 + $0xa8] sm:$0xf]
        %v950 = vld [vmem:[#allocation13 + $0xac] sm:$0xf]
        %v951 = vld [vmem:[#allocation13 + $0xb0] sm:$0xf]
        %v952 = vld [vmem:[#allocation13 + $0xb4] sm:$0xf]
        %v953 = vld [vmem:[#allocation13 + $0xb8] sm:$0xf]
        %v954 = vld [vmem:[#allocation13 + $0xbc] sm:$0xf]
        %v955 = vld [vmem:[%s7] sm:$0x1]
        %v957 = vperm.slane %v955, 0
        %v1007 = vunpack.c.l.b16 %v907
        %v1008 = vunpack.c.l.b16 %v908
        %v1009 = vunpack.c.l.b16 %v909
        %v1010 = vunpack.c.l.b16 %v910
        %v1011 = vunpack.c.l.b16 %v911
        %v1012 = vunpack.c.l.b16 %v912
        %v1013 = vunpack.c.l.b16 %v913
        %v1014 = vunpack.c.l.b16 %v914
        %v1015 = vunpack.c.l.b16 %v915
        %v1016 = vunpack.c.l.b16 %v916
        %v1017 = vunpack.c.l.b16 %v917
        %v1018 = vunpack.c.l.b16 %v918
        %v1019 = vunpack.c.l.b16 %v919
        %v1020 = vunpack.c.l.b16 %v920
        %v1021 = vunpack.c.l.b16 %v921
        %v1022 = vunpack.c.l.b16 %v922
        %v1023 = vunpack.c.l.b16 %v923
        %v1024 = vunpack.c.l.b16 %v924
        %v1025 = vunpack.c.l.b16 %v925
        %v1026 = vunpack.c.l.b16 %v926
        %v1027 = vunpack.c.l.b16 %v927
        %v1028 = vunpack.c.l.b16 %v928
        %v1029 = vunpack.c.l.b16 %v929
        %v1030 = vunpack.c.l.b16 %v930
        %v1031 = vunpack.c.l.b16 %v931
        %v1032 = vunpack.c.l.b16 %v932
        %v1033 = vunpack.c.l.b16 %v933
        %v1034 = vunpack.c.l.b16 %v934
        %v1035 = vunpack.c.l.b16 %v935
        %v1036 = vunpack.c.l.b16 %v936
        %v1037 = vunpack.c.l.b16 %v937
        %v1038 = vunpack.c.l.b16 %v938
        %v1039 = vunpack.c.l.b16 %v939
        %v1040 = vunpack.c.l.b16 %v940
        %v1041 = vunpack.c.l.b16 %v941
        %v1042 = vunpack.c.l.b16 %v942
        %v1043 = vunpack.c.l.b16 %v943
        %v1044 = vunpack.c.l.b16 %v944
        %v1045 = vunpack.c.l.b16 %v945
        %v1046 = vunpack.c.l.b16 %v946
        %v1047 = vunpack.c.l.b16 %v947
        %v1048 = vunpack.c.l.b16 %v948
        %v1049 = vunpack.c.l.b16 %v949
        %v1050 = vunpack.c.l.b16 %v950
        %v1051 = vunpack.c.l.b16 %v951
        %v1052 = vunpack.c.l.b16 %v952
        %v1053 = vunpack.c.l.b16 %v953
        %v1054 = vunpack.c.l.b16 %v954
        %v1055 = vpack.c.b16 %v1008, %v1007
        %v1056 = vpack.c.b16 %v1010, %v1009
        %v1057 = vpack.c.b16 %v1012, %v1011
        %v1058 = vpack.c.b16 %v1014, %v1013
        %v1059 = vpack.c.b16 %v1016, %v1015
        %v1060 = vpack.c.b16 %v1018, %v1017
        %v1061 = vpack.c.b16 %v1020, %v1019
        %v1062 = vpack.c.b16 %v1022, %v1021
        %v1063 = vpack.c.b16 %v1024, %v1023
        %v1064 = vpack.c.b16 %v1026, %v1025
        %v1065 = vpack.c.b16 %v1028, %v1027
        %v1066 = vpack.c.b16 %v1030, %v1029
        %v1067 = vpack.c.b16 %v1032, %v1031
        %v1068 = vpack.c.b16 %v1034, %v1033
        %v1069 = vpack.c.b16 %v1036, %v1035
        %v1070 = vpack.c.b16 %v1038, %v1037
        %v1071 = vpack.c.b16 %v1040, %v1039
        %v1072 = vpack.c.b16 %v1042, %v1041
        %v1073 = vpack.c.b16 %v1044, %v1043
        %v1074 = vpack.c.b16 %v1046, %v1045
        %v1075 = vpack.c.b16 %v1048, %v1047
        %v1076 = vpack.c.b16 %v1050, %v1049
        %v1077 = vpack.c.b16 %v1052, %v1051
        %v1078 = vpack.c.b16 %v1054, %v1053
        %1103 = vmatpush.bf16.msra.mxu0 %v1062
        %1104 = vmatpush.bf16.msra.mxu0 %v1061
        %1105 = vmatpush.bf16.msra.mxu0 %v1060
        %1106 = vmatpush.bf16.msra.mxu0 %v1059
        %1107 = vmatpush.bf16.msra.mxu0 %v1058
        %1108 = vmatpush.bf16.msra.mxu0 %v1057
        %1109 = vmatpush.bf16.msra.mxu0 %v1056
        %1110 = vmatpush.bf16.msra.mxu0 %v1055
        %1111 = vmatmul.bf16.gmra.mxu0 %v904
        %v1112 = vpop.f32.mrf.mxu0
        %v1113 = vadd.f32 %v957, %v1112
        %v1114 = vpop.f32.mrf.mxu0
        %1115 = vdwg.mxu0
        %1116 = vmatpush.bf16.msra.mxu0 %v1070
        %1117 = vmatpush.bf16.msra.mxu0 %v1069
        %1118 = vmatpush.bf16.msra.mxu0 %v1068
        %1119 = vmatpush.bf16.msra.mxu0 %v1067
        %1120 = vmatpush.bf16.msra.mxu0 %v1066
        %1121 = vmatpush.bf16.msra.mxu0 %v1065
        %1122 = vmatpush.bf16.msra.mxu0 %v1064
        %1123 = vmatpush.bf16.msra.mxu0 %v1063
        %1124 = vmatmul.bf16.gmra.mxu0 %v905
        %v1125 = vpop.f32.mrf.mxu0
        %v1126 = vadd.f32 %v1113, %v1125
        %v1127 = vpop.f32.mrf.mxu0
        %1128 = vdwg.mxu0
        %1129 = vmatpush.bf16.msra.mxu0 %v1078
        %1130 = vmatpush.bf16.msra.mxu0 %v1077
        %1131 = vmatpush.bf16.msra.mxu0 %v1076
        %1132 = vmatpush.bf16.msra.mxu0 %v1075
        %1133 = vmatpush.bf16.msra.mxu0 %v1074
        %1134 = vmatpush.bf16.msra.mxu0 %v1073
        %1135 = vmatpush.bf16.msra.mxu0 %v1072
        %1136 = vmatpush.bf16.msra.mxu0 %v1071
        %1137 = vmatmul.bf16.gmra.mxu0 %v906
        %v1138 = vpop.f32.mrf.mxu0
        %v1139 = vadd.f32 %v1126, %v1138
        %v1140 = vpop.f32.mrf.mxu0
        %1141 = vdwg.mxu0
        %v1142 = vld [vmem:[%s8] sm:$0x1]
        %s1143 = scalar_lea.vmem %s8, 1
        %v1144 = vld [vmem:[%s1143] sm:$0x1]
        %1145 = vadd.xlane.f32.xlu0 %v1139
        %v1146 = vpop.xlane.xlu0 %1145
        %v1147 = vrcp.pop 128.0
        %v1148 = vmul.f32 128.0, %v1147
        %v1149 = vsub.f32 1.0, %v1148
        %v1150 = vmul.f32 %v1147, %v1149
        %v1151 = vadd.f32 %v1147, %v1150
        %vm1152 = vweird.f32 %v1147
        %v1153 = vsel %vm1152, %v1147, %v1151
        %v1154 = vmul.f32 %v1146, %v1153
        %v1155 = vsub.f32 %v1139, %v1154
        %v1156 = vmul.f32 %v1155, %v1155
        %1157 = vadd.xlane.f32.xlu0 %v1156
        %v1158 = vpop.xlane.xlu0 %1157
        %v1159 = vmul.f32 %v1158, %v1153
        %v1160 = vadd.f32 %v1159, 1e-05
        %v1161 = vrsqrt.pop %v1160
        %v1162 = vmul.f32 %v1161, %v1160
        %v1163 = vmul.f32 %v1162, %v1161
        %v1164 = vmul.f32 0.5, %v1163
        %v1165 = vsub.f32 1.5, %v1164
        %v1166 = vmul.f32 %v1161, %v1165
        %vm1167 = vweird.f32 %v1160
        %vm1168 = vweird.f32 %v1161
        %vm1169 = vmor %vm1167, %vm1168
        %v1170 = vsel %vm1169, %v1161, %v1166
        %v1171 = vmul.f32 %v1155, %v1170
        %v1173 = vperm.slane %v1142, 0
        %v1175 = vmul.f32 %v1171, %v1173
        %v1177 = vperm.slane %v1144, 0
        %v1179 = vadd.f32 %v1175, %v1177
        %v1180 = vmax.f32 %v1179, 0.0
        %v1181 = vpack.c.bf16 %v1180, %v1180
        %v1182 = vld [vmem:[#allocation14] sm:$0xf]
        %v1183 = vld [vmem:[#allocation14 + $0x4] sm:$0xf]
        %v1184 = vld [vmem:[#allocation14 + $0x8] sm:$0xf]
        %v1185 = vld [vmem:[#allocation14 + $0xc] sm:$0xf]
        %v1186 = vld [vmem:[#allocation14 + $0x10] sm:$0xf]
        %v1187 = vld [vmem:[#allocation14 + $0x14] sm:$0xf]
        %v1188 = vld [vmem:[#allocation14 + $0x18] sm:$0xf]
        %v1189 = vld [vmem:[#allocation14 + $0x1c] sm:$0xf]
        %v1190 = vld [vmem:[#allocation14 + $0x20] sm:$0xf]
        %v1191 = vld [vmem:[#allocation14 + $0x24] sm:$0xf]
        %v1192 = vld [vmem:[#allocation14 + $0x28] sm:$0xf]
        %v1193 = vld [vmem:[#allocation14 + $0x2c] sm:$0xf]
        %v1194 = vld [vmem:[#allocation14 + $0x30] sm:$0xf]
        %v1195 = vld [vmem:[#allocation14 + $0x34] sm:$0xf]
        %v1196 = vld [vmem:[#allocation14 + $0x38] sm:$0xf]
        %v1197 = vld [vmem:[#allocation14 + $0x3c] sm:$0xf]
        %v1198 = vld [vmem:[%s10] sm:$0x1]
        %v1200 = vperm.slane %v1198, 0
        %v1218 = vunpack.c.l.b16 %v1182
        %v1219 = vunpack.c.l.b16 %v1183
        %v1220 = vunpack.c.l.b16 %v1184
        %v1221 = vunpack.c.l.b16 %v1185
        %v1222 = vunpack.c.l.b16 %v1186
        %v1223 = vunpack.c.l.b16 %v1187
        %v1224 = vunpack.c.l.b16 %v1188
        %v1225 = vunpack.c.l.b16 %v1189
        %v1226 = vunpack.c.l.b16 %v1190
        %v1227 = vunpack.c.l.b16 %v1191
        %v1228 = vunpack.c.l.b16 %v1192
        %v1229 = vunpack.c.l.b16 %v1193
        %v1230 = vunpack.c.l.b16 %v1194
        %v1231 = vunpack.c.l.b16 %v1195
        %v1232 = vunpack.c.l.b16 %v1196
        %v1233 = vunpack.c.l.b16 %v1197
        %v1234 = vpack.c.b16 %v1219, %v1218
        %v1235 = vpack.c.b16 %v1221, %v1220
        %v1236 = vpack.c.b16 %v1223, %v1222
        %v1237 = vpack.c.b16 %v1225, %v1224
        %v1238 = vpack.c.b16 %v1227, %v1226
        %v1239 = vpack.c.b16 %v1229, %v1228
        %v1240 = vpack.c.b16 %v1231, %v1230
        %v1241 = vpack.c.b16 %v1233, %v1232
        %1250 = vmatpush.bf16.msra.mxu0 %v1241
        %1251 = vmatpush.bf16.msra.mxu0 %v1240
        %1252 = vmatpush.bf16.msra.mxu0 %v1239
        %1253 = vmatpush.bf16.msra.mxu0 %v1238
        %1254 = vmatpush.bf16.msra.mxu0 %v1237
        %1255 = vmatpush.bf16.msra.mxu0 %v1236
        %1256 = vmatpush.bf16.msra.mxu0 %v1235
        %1257 = vmatpush.bf16.msra.mxu0 %v1234
        %1258 = vmatmul.bf16.gmra.mxu0 %v1181
        %v1259 = vpop.f32.mrf.mxu0
        %v1260 = vadd.f32 %v1200, %v1259
        %v1261 = vpop.f32.mrf.mxu0
        %1262 = vdwg.mxu0
        %vm1263 = vcmp.lt.s32.totalorder %v836, 96
        %v1264 = vsel %vm1263, 1, 0
        %v1265 = vcvt.s32.f32 %v1264
        %v1266 = vld [vmem:[%s11] sm:$0x1]
        %s1267 = scalar_lea.vmem %s11, 1
        %v1268 = vld [vmem:[%s1267] sm:$0x1]
        %1269 = vadd.xlane.f32.xlu0 %v1260
        %v1270 = vpop.xlane.xlu0 %1269
        %v1271 = vmul.f32 %v1270, %v853
        %v1272 = vsub.f32 %v1260, %v1271
        %v1273 = vmul.f32 %v1272, %v1265
        %v1274 = vmul.f32 %v1273, %v1273
        %1275 = vadd.xlane.f32.xlu0 %v1274
        %v1276 = vpop.xlane.xlu0 %1275
        %v1277 = vmul.f32 %v1276, %v853
        %v1278 = vadd.f32 %v1277, 1e-05
        %v1279 = vrsqrt.pop %v1278
        %v1280 = vmul.f32 %v1279, %v1278
        %v1281 = vmul.f32 %v1280, %v1279
        %v1282 = vmul.f32 0.5, %v1281
        %v1283 = vsub.f32 1.5, %v1282
        %v1284 = vmul.f32 %v1279, %v1283
        %vm1285 = vweird.f32 %v1278
        %vm1286 = vweird.f32 %v1279
        %vm1287 = vmor %vm1285, %vm1286
        %v1288 = vsel %vm1287, %v1279, %v1284
        %v1289 = vmul.f32 %v1273, %v1288
        %v1291 = vperm.slane %v1266, 0
        %v1293 = vmul.f32 %v1289, %v1291
        %v1295 = vperm.slane %v1268, 0
        %v1297 = vadd.f32 %v1293, %v1295
        %1298 = vst [vmem:[%s588] sm:$0xff] %v1297
        %s1299 = sand.u32 %s310, 1
        %s1300 = scalar_lea.sflag [#allocation4], %s1299
        %s1301 = sand.u32 %s310, 1
        %s1302 = smul.addr %s1301, 8
        %s1303 = scalar_lea.vmem [#allocation16], %s1302
        // Predicated region
        $region101: #{tpu_custom_call.1} parent=67 // pred_check
          %p1304 = pneg %p320
        $region102: #{tpu_custom_call.1} parent=67 // pred_check_branch
          %1306 = sbr.rel (%p1304) target = $region104
        $region103: #{tpu_custom_call.1} parent=67 // pred_region
          %1308 = vsyncadd %s1300, 0
          %s1309 = smul.addr %s35, 8
          %s1310 = scalar_lea.hbm %s12, %s1309
          %s1312 = sshll.u32 %s1303, 4
          %s1313 = int_to_ptr.vmem [resolvable:$true] %s1312
          %s1314 = sshll.u32 %s1310, 4
          %s1315 = int_to_ptr.hbm [resolvable:$true] %s1314
          %1317 = dma.vmem_to_hbm [thread:$0]  %s1313, 128, %s1315, %s1300
        $region104: #{tpu_custom_call.1} parent=67 // pred_fallthru
          _
      $region68: #{tpu_custom_call.1} parent=5 // pred_fallthru
        _
      %p1318 = scmp.le.s32.totalorder 2, %s30
      // Predicated region
      $region105: #{tpu_custom_call.1} parent=5 // pred_check
        %p1319 = pneg %p1318
      $region106: #{tpu_custom_call.1} parent=5 // pred_check_branch
        %1321 = sbr.rel (%p1319) target = $region108
      $region107: #{tpu_custom_call.1} parent=5 // pred_region
        %s1322 = ssub.s32 %s30, 2
        // Predicated region
        $region109: #{tpu_custom_call.1} parent=107 // pred_check
          %p1323 = pneg %p326
        $region110: #{tpu_custom_call.1} parent=107 // pred_check_branch
          %1325 = sbr.rel (%p1323) target = $region112
        $region111: #{tpu_custom_call.1} parent=107 // pred_region
          %s1326 = sand.u32 %s311, 1
          %s1327 = scalar_lea.sflag [#allocation4], %s1326
          %s1328 = sand.u32 %s311, 1
          %s1329 = smul.addr %s1328, 8
          %s1330 = scalar_lea.vmem [#allocation16], %s1329
          %1332 = dma.done %s1327, 128
        $region112: #{tpu_custom_call.1} parent=107 // pred_fallthru
          _
      $region108: #{tpu_custom_call.1} parent=5 // pred_fallthru
        _
    $region6: #{tpu_custom_call.1} parent=1 // loop_footer
      %s34 = sadd.s32 1, %s30
    $region7: #{tpu_custom_call.1} parent=1 // loop_footer_branch
      %29 = sbr.rel target = $region3
    $region8: #{tpu_custom_call.1} parent=1 // loop_exit
      _
    %1333 = vsyncpa [#allocation3], 1
    %s1334 = scalar_lea.sflag [#allocation3], 1
    %1335 = vsyncpa %s1334, 1
    %1336 = vsyncpa [#allocation6], 1
    %s1337 = scalar_lea.sflag [#allocation6], 1
    %1338 = vsyncpa %s1337, 1
    %1339 = vsyncpa [#allocation9], 1
    %1340 = vsyncpa [#allocation12], 1
    %1341 = vsyncpa [#allocation15], 1
    %1342 = vsyncpa [#allocation4], 1
    %s1343 = scalar_lea.sflag [#allocation4], 1
    %1344 = vsyncpa %s1343, 1

</llo_original>
